<compile_context>
chip_gen: v6e
topology: v6e:2x2x1
jax: 0.10.0
libtpu: 0.0.40
codegen_flags: <defaults>
</compile_context>

<pallas_src>
import functools

import jax
import jax.numpy as jnp
import numpy as np
from jax.experimental import pallas as pl
from jax.experimental.pallas import tpu as pltpu


# ----------------------------------------------------------------------------
# Mask generation (same semantics as the PyTorch helper, numpy -> jnp int32)
# ----------------------------------------------------------------------------
def generate_attn_mask(seq_len, station_num):
    attn_mask = np.zeros((seq_len, seq_len))
    attn_mask[:, range(0, station_num)] = 1
    attn_mask = np.logical_or(attn_mask, np.eye(seq_len)).astype(np.int32)
    return jnp.asarray(attn_mask)  # (seq_len, seq_len)


# ----------------------------------------------------------------------------
# Kernel: one (batch, query-tile) per grid step.
# ----------------------------------------------------------------------------
def _shielded_attn_kernel(h_ref, ht_ref, rpe_ref, bias_ref,
                          wqt_ref, wk_ref, wv_ref, wfc_ref, bfc_ref,
                          lnw_ref, lnb_ref, o_ref, *,
                          n_head, d_k, tq, eps):
    L = h_ref.shape[1]
    D = h_ref.shape[2]
    i0 = pl.multiple_of(pl.program_id(1) * tq, tq)

    h_full = h_ref[0]                       # (L, D)   rows j
    h_i = h_ref[0, pl.ds(i0, tq), :]        # (TQ, D)  rows i (output tile / residual)

    # Projections on the MXU.
    #   q^T is produced directly in transposed orientation (rows = feature c,
    #   cols = position j) so per-(h,d) rows broadcast across sublanes for free.
    qT = jnp.dot(wqt_ref[...], ht_ref[0],
                 preferred_element_type=jnp.float32)          # (H*dk, L), scale folded
    k_i = jnp.dot(h_i, wk_ref[...],
                  preferred_element_type=jnp.float32)         # (TQ, H*dk)
    v_all = jnp.dot(h_full, wv_ref[...],
                    preferred_element_type=jnp.float32)       # (L, H*dk)

    # Score accumulators initialized with the additive mask bias (0 / -1e10):
    # scores[i, j] = sum_d q[j, c] * k[i, c] * rpe[i, j, d]   (c = h*d_k + d)
    bias = bias_ref[...]                                      # (TQ, L) f32
    acc = [bias for _ in range(n_head)]

    for d in range(d_k):
        rpe_d = rpe_ref[0, d].astype(jnp.float32)             # (TQ, L), lane-dense in j
        for h in range(n_head):
            c = h * d_k + d
            acc[h] = acc[h] + (k_i[:, c:c + 1] * qT[c:c + 1, :]) * rpe_d

    # Per-head softmax over j, then probs @ V and the fc projection on the MXU.
    out = jnp.zeros((tq, D), jnp.float32)
    for h in range(n_head):
        s = acc[h]                                            # (TQ, L)
        m = jnp.max(s, axis=-1, keepdims=True)
        e = jnp.exp(s - m)
        denom = jnp.sum(e, axis=-1, keepdims=True)
        p = e * pl.reciprocal(denom, approx=True)             # (TQ, L)
        v_h = v_all[:, h * d_k:(h + 1) * d_k]                 # (L, dk) static lane slice
        attn_h = jnp.dot(p, v_h, preferred_element_type=jnp.float32)  # (TQ, dk)
        out = out + jnp.dot(attn_h, wfc_ref[h * d_k:(h + 1) * d_k, :],
                            preferred_element_type=jnp.float32)        # (TQ, D)

    # bias + residual + LayerNorm (biased variance, eps=1e-6)
    ctx = out + bfc_ref[...] + h_i
    mean = jnp.mean(ctx, axis=-1, keepdims=True)
    var = jnp.mean((ctx - mean) ** 2, axis=-1, keepdims=True)
    normed = (ctx - mean) * jax.lax.rsqrt(var + eps)
    o_ref[0] = normed * lnw_ref[...] + lnb_ref[...]


# ----------------------------------------------------------------------------
# Wrapper: layout plumbing + pallas_call
# ----------------------------------------------------------------------------
def shielded_attention(hidden, rpe, mask, wq, wk, wv, wfc, bfc, lnw, lnb,
                       *, n_head, d_k, tq=None,
                       rpe_compute_dtype=jnp.float32):
    bsz, L, D = hidden.shape
    HK = n_head * d_k

    # Query-tile size. For real workloads pick the largest multiple of 8 that
    # keeps ~2x (rpe tile + score tiles + h/out buffers) under VMEM; on v7x
    # (64 MiB) choose roughly half the v5e/v6e tile.
    if tq is None:
        tq = L if (L <= 128 or L % 128 != 0) else 128
    assert (tq == L) or (L % tq == 0 and tq % 8 == 0)
    n_it = L // tq

    hidden = hidden.astype(jnp.float32)
    hidden_t = jnp.swapaxes(hidden, 1, 2)                         # (b, D, L), for q^T
    # (b, L_i, L_j, dk) -> (b, dk, L_i, L_j): per-d slices become lane-dense tiles.
    rpe_t = jnp.transpose(rpe, (0, 3, 1, 2)).astype(rpe_compute_dtype)
    # Additive mask bias (0 / -1e10), replaces int-compare + select in-kernel.
    mask_bias = jnp.where(mask == 0, jnp.float32(-1e10), jnp.float32(0.0))
    # Fold 1/sqrt(d_k) into the Q weight; store it transposed (HK, D).
    wq_t = (wq.astype(jnp.float32) * (d_k ** -0.5)).T

    kernel = functools.partial(_shielded_attn_kernel,
                               n_head=n_head, d_k=d_k, tq=tq, eps=1e-6)
    return pl.pallas_call(
        kernel,
        out_shape=jax.ShapeDtypeStruct((bsz, L, D), jnp.float32),
        grid=(bsz, n_it),
        in_specs=[
            pl.BlockSpec((1, L, D), lambda b, it: (b, 0, 0)),          # hidden
            pl.BlockSpec((1, D, L), lambda b, it: (b, 0, 0)),          # hidden^T
            pl.BlockSpec((1, d_k, tq, L), lambda b, it: (b, 0, it, 0)),  # rpe (d,i,j)
            pl.BlockSpec((tq, L), lambda b, it: (it, 0)),              # mask bias
            pl.BlockSpec((HK, D), lambda b, it: (0, 0)),               # w_q^T (scaled)
            pl.BlockSpec((D, HK), lambda b, it: (0, 0)),               # w_k
            pl.BlockSpec((D, HK), lambda b, it: (0, 0)),               # w_v
            pl.BlockSpec((HK, D), lambda b, it: (0, 0)),               # fc weight
            pl.BlockSpec((1, D), lambda b, it: (0, 0)),                # fc bias
            pl.BlockSpec((1, D), lambda b, it: (0, 0)),                # ln weight
            pl.BlockSpec((1, D), lambda b, it: (0, 0)),                # ln bias
        ],
        out_specs=pl.BlockSpec((1, tq, D), lambda b, it: (b, it, 0)),
        compiler_params=pltpu.CompilerParams(
            dimension_semantics=("parallel", "parallel"),
            vmem_limit_bytes=64 * 1024 * 1024),
    )(hidden, hidden_t, rpe_t, mask_bias, wq_t,
      wk.astype(jnp.float32), wv.astype(jnp.float32), wfc.astype(jnp.float32),
      bfc.astype(jnp.float32), lnw.astype(jnp.float32), lnb.astype(jnp.float32))


# ----------------------------------------------------------------------------
# Pure-JAX reference (mirrors the PyTorch forward exactly, eval mode)
# ----------------------------------------------------------------------------
def reference(hidden, rpe, mask, wq, wk, wv, wfc, bfc, lnw, lnb, *, n_head, d_k):
    bsz, L, D = hidden.shape
    q = hidden @ wq
    k = hidden @ wk
    v = hidden @ wv
    q = q.reshape(bsz, L, n_head, d_k).transpose(0, 2, 1, 3)
    k = k.reshape(bsz, L, n_head, d_k).transpose(0, 2, 1, 3)
    v = v.reshape(bsz, L, n_head, d_k).transpose(0, 2, 1, 3)
    aw1 = q[:, :, None, :, :] * k[:, :, :, None, :]              # (b,h,L,L,dk)
    aw = jnp.sum(aw1 * rpe[:, None, :, :, :], axis=-1) / (d_k ** 0.5)
    aw = jnp.where(mask[None, None, :, :] == 0, -1e10, aw)
    aw = jax.nn.softmax(aw, axis=-1)
    attn = aw @ v                                                # (b,h,L,dk)
    attn = attn.transpose(0, 2, 1, 3).reshape(bsz, L, n_head * d_k)
    out = attn @ wfc + bfc[0]
    ctx = out + hidden
    mean = ctx.mean(-1, keepdims=True)
    var = ((ctx - mean) ** 2).mean(-1, keepdims=True)
    return (ctx - mean) / jnp.sqrt(var + 1e-6) * lnw[0] + lnb[0]


# ----------------------------------------------------------------------------
if __name__ == "__main__":
    # Small, module-consistent config
    bsz, seq_len, d_model = 2, 8, 32
    n_head, d_k = 4, 8
    station_num = 3

    key = jax.random.PRNGKey(0)
    keys = jax.random.split(key, 8)

    hidden = jax.random.normal(keys[0], (bsz, seq_len, d_model), jnp.float32)
    rpe = jax.random.normal(keys[1], (bsz, seq_len, seq_len, d_k), jnp.float32)

    # Weights stored as (in, out), i.e. W.T of the PyTorch nn.Linear weight.
    scale = 0.1
    wq = scale * jax.random.normal(keys[2], (d_model, n_head * d_k), jnp.float32)
    wk = scale * jax.random.normal(keys[3], (d_model, n_head * d_k), jnp.float32)
    wv = scale * jax.random.normal(keys[4], (d_model, n_head * d_k), jnp.float32)
    wfc = scale * jax.random.normal(keys[5], (n_head * d_k, d_model), jnp.float32)
    bfc = scale * jax.random.normal(keys[6], (1, d_model), jnp.float32)
    lnw = jnp.ones((1, d_model), jnp.float32)
    lnb = jnp.zeros((1, d_model), jnp.float32)

    mask = generate_attn_mask(seq_len, station_num)  # (seq_len, seq_len) int32

    ref = reference(hidden, rpe, mask, wq, wk, wv, wfc, bfc, lnw, lnb,
                    n_head=n_head, d_k=d_k)
    ref = jax.block_until_ready(ref)

    # f32 rpe path (tolerance slightly above 1e-4 because of the approximate
    # EUP reciprocal in the softmax normalization).
    out_f32 = shielded_attention(hidden, rpe, mask, wq, wk, wv, wfc, bfc, lnw, lnb,
                                 n_head=n_head, d_k=d_k,
                                 rpe_compute_dtype=jnp.float32)
    out_f32 = jax.block_until_ready(out_f32)
    np.testing.assert_allclose(np.asarray(out_f32), np.asarray(ref),
                               rtol=5e-3, atol=5e-3)

    # bf16 rpe transfer path (halves the dominant HBM traffic); scores are
    # accumulated in f32, tolerance loosened accordingly.
    out_bf16 = shielded_attention(hidden, rpe, mask, wq, wk, wv, wfc, bfc, lnw, lnb,
                                  n_head=n_head, d_k=d_k,
                                  rpe_compute_dtype=jnp.bfloat16)
    out_bf16 = jax.block_until_ready(out_bf16)
    np.testing.assert_allclose(np.asarray(out_bf16), np.asarray(ref),
                               rtol=5e-2, atol=5e-2)

    print("KERNEL_OK")
</pallas_src>

<mosaic_0001>
module attributes {stable_mosaic.version = 11 : i64} {
  func.func @_shielded_attn_kernel(%arg0: i32, %arg1: i32, %arg2: memref<1x8x32xf32, #tpu.memory_space<vmem>>, %arg3: memref<1x32x8xf32, #tpu.memory_space<vmem>>, %arg4: memref<1x8x8x8xf32, #tpu.memory_space<vmem>>, %arg5: memref<8x8xf32, #tpu.memory_space<vmem>>, %arg6: memref<32x32xf32, #tpu.memory_space<vmem>>, %arg7: memref<32x32xf32, #tpu.memory_space<vmem>>, %arg8: memref<32x32xf32, #tpu.memory_space<vmem>>, %arg9: memref<32x32xf32, #tpu.memory_space<vmem>>, %arg10: memref<1x32xf32, #tpu.memory_space<vmem>>, %arg11: memref<1x32xf32, #tpu.memory_space<vmem>>, %arg12: memref<1x32xf32, #tpu.memory_space<vmem>>, %arg13: memref<1x8x32xf32, #tpu.memory_space<vmem>>) attributes {dimension_semantics = [#tpu.dimension_semantics<parallel>, #tpu.dimension_semantics<parallel>], iteration_bounds = array<i64: 2, 1>, scalar_prefetch = 0 : i64, scratch_operands = 0 : i64, tpu.core_type = #tpu.core_type<tc>, window_params = [{transform_indices = @transform_0, window_bounds = array<i64: 1, 8, 32>}, {transform_indices = @transform_1, window_bounds = array<i64: 1, 32, 8>}, {transform_indices = @transform_2, window_bounds = array<i64: 1, 8, 8, 8>}, {transform_indices = @transform_3, window_bounds = array<i64: 8, 8>}, {pipeline_mode = #tpu.pipeline_mode<synchronous>, transform_indices = @transform_4, window_bounds = array<i64: 32, 32>}, {pipeline_mode = #tpu.pipeline_mode<synchronous>, transform_indices = @transform_5, window_bounds = array<i64: 32, 32>}, {pipeline_mode = #tpu.pipeline_mode<synchronous>, transform_indices = @transform_6, window_bounds = array<i64: 32, 32>}, {pipeline_mode = #tpu.pipeline_mode<synchronous>, transform_indices = @transform_7, window_bounds = array<i64: 32, 32>}, {pipeline_mode = #tpu.pipeline_mode<synchronous>, transform_indices = @transform_8, window_bounds = array<i64: 1, 32>}, {pipeline_mode = #tpu.pipeline_mode<synchronous>, transform_indices = @transform_9, window_bounds = array<i64: 1, 32>}, {pipeline_mode = #tpu.pipeline_mode<synchronous>, transform_indices = @transform_10, window_bounds = array<i64: 1, 32>}, {transform_indices = @transform_11, window_bounds = array<i64: 1, 8, 32>}]} {
    %c8_i32 = arith.constant 8 : i32
    %0 = arith.muli %arg1, %c8_i32 : i32
    %1 = tpu.assume_multiple %0, 8 : i32
    %c0 = arith.constant 0 : index
    %c0_0 = arith.constant 0 : index
    %c0_1 = arith.constant 0 : index
    %2 = vector.load %arg2[%c0, %c0_0, %c0_1] : memref<1x8x32xf32, #tpu.memory_space<vmem>>, vector<1x8x32xf32>
    %3 = vector.shape_cast %2 : vector<1x8x32xf32> to vector<8x32xf32>
    %c0_2 = arith.constant 0 : index
    %4 = arith.index_cast %1 : i32 to index
    %c0_3 = arith.constant 0 : index
    %5 = vector.load %arg2[%c0_2, %4, %c0_3] : memref<1x8x32xf32, #tpu.memory_space<vmem>>, vector<1x8x32xf32>
    %6 = vector.shape_cast %5 : vector<1x8x32xf32> to vector<8x32xf32>
    %c0_4 = arith.constant 0 : index
    %c0_5 = arith.constant 0 : index
    %7 = vector.load %arg6[%c0_4, %c0_5] : memref<32x32xf32, #tpu.memory_space<vmem>>, vector<32x32xf32>
    %c0_6 = arith.constant 0 : index
    %c0_7 = arith.constant 0 : index
    %c0_8 = arith.constant 0 : index
    %8 = vector.load %arg3[%c0_6, %c0_7, %c0_8] : memref<1x32x8xf32, #tpu.memory_space<vmem>>, vector<1x32x8xf32>
    %9 = vector.shape_cast %8 : vector<1x32x8xf32> to vector<32x8xf32>
    %cst = arith.constant dense<0.000000e+00> : vector<32x8xf32>
    %10 = tpu.matmul %7, %9, %cst {dimension_numbers = #tpu.dot_dimension_numbers<[1], [0], [0], [1], [0, 0, 1, 1], [], []>} : vector<32x32xf32>, vector<32x8xf32>, vector<32x8xf32> -> vector<32x8xf32>
    %c0_9 = arith.constant 0 : index
    %c0_10 = arith.constant 0 : index
    %11 = vector.load %arg7[%c0_9, %c0_10] : memref<32x32xf32, #tpu.memory_space<vmem>>, vector<32x32xf32>
    %cst_11 = arith.constant dense<0.000000e+00> : vector<8x32xf32>
    %12 = tpu.matmul %6, %11, %cst_11 {dimension_numbers = #tpu.dot_dimension_numbers<[1], [0], [0], [1], [0, 0, 1, 1], [], []>} : vector<8x32xf32>, vector<32x32xf32>, vector<8x32xf32> -> vector<8x32xf32>
    %c0_12 = arith.constant 0 : index
    %c0_13 = arith.constant 0 : index
    %13 = vector.load %arg8[%c0_12, %c0_13] : memref<32x32xf32, #tpu.memory_space<vmem>>, vector<32x32xf32>
    %cst_14 = arith.constant dense<0.000000e+00> : vector<8x32xf32>
    %14 = tpu.matmul %3, %13, %cst_14 {dimension_numbers = #tpu.dot_dimension_numbers<[1], [0], [0], [1], [0, 0, 1, 1], [], []>} : vector<8x32xf32>, vector<32x32xf32>, vector<8x32xf32> -> vector<8x32xf32>
    %c0_15 = arith.constant 0 : index
    %c0_16 = arith.constant 0 : index
    %15 = vector.load %arg5[%c0_15, %c0_16] : memref<8x8xf32, #tpu.memory_space<vmem>>, vector<8x8xf32>
    %c0_17 = arith.constant 0 : index
    %c0_18 = arith.constant 0 : index
    %c0_19 = arith.constant 0 : index
    %c0_20 = arith.constant 0 : index
    %16 = vector.load %arg4[%c0_17, %c0_18, %c0_19, %c0_20] : memref<1x8x8x8xf32, #tpu.memory_space<vmem>>, vector<1x1x8x8xf32>
    %17 = vector.shape_cast %16 : vector<1x1x8x8xf32> to vector<8x8xf32>
    %18 = vector.extract_strided_slice %12 {offsets = [0, 0], sizes = [8, 1], strides = [1, 1]} : vector<8x32xf32> to vector<8x1xf32>
    %19 = vector.extract_strided_slice %10 {offsets = [0, 0], sizes = [1, 8], strides = [1, 1]} : vector<32x8xf32> to vector<1x8xf32>
    %20 = vector.broadcast %18 : vector<8x1xf32> to vector<8x8xf32>
    %21 = vector.broadcast %19 : vector<1x8xf32> to vector<8x8xf32>
    %22 = arith.mulf %20, %21 : vector<8x8xf32>
    %23 = arith.mulf %22, %17 : vector<8x8xf32>
    %24 = arith.addf %15, %23 : vector<8x8xf32>
    %25 = vector.extract_strided_slice %12 {offsets = [0, 8], sizes = [8, 1], strides = [1, 1]} : vector<8x32xf32> to vector<8x1xf32>
    %26 = vector.extract_strided_slice %10 {offsets = [8, 0], sizes = [1, 8], strides = [1, 1]} : vector<32x8xf32> to vector<1x8xf32>
    %27 = vector.broadcast %25 : vector<8x1xf32> to vector<8x8xf32>
    %28 = vector.broadcast %26 : vector<1x8xf32> to vector<8x8xf32>
    %29 = arith.mulf %27, %28 : vector<8x8xf32>
    %30 = arith.mulf %29, %17 : vector<8x8xf32>
    %31 = arith.addf %15, %30 : vector<8x8xf32>
    %32 = vector.extract_strided_slice %12 {offsets = [0, 16], sizes = [8, 1], strides = [1, 1]} : vector<8x32xf32> to vector<8x1xf32>
    %33 = vector.extract_strided_slice %10 {offsets = [16, 0], sizes = [1, 8], strides = [1, 1]} : vector<32x8xf32> to vector<1x8xf32>
    %34 = vector.broadcast %32 : vector<8x1xf32> to vector<8x8xf32>
    %35 = vector.broadcast %33 : vector<1x8xf32> to vector<8x8xf32>
    %36 = arith.mulf %34, %35 : vector<8x8xf32>
    %37 = arith.mulf %36, %17 : vector<8x8xf32>
    %38 = arith.addf %15, %37 : vector<8x8xf32>
    %39 = vector.extract_strided_slice %12 {offsets = [0, 24], sizes = [8, 1], strides = [1, 1]} : vector<8x32xf32> to vector<8x1xf32>
    %40 = vector.extract_strided_slice %10 {offsets = [24, 0], sizes = [1, 8], strides = [1, 1]} : vector<32x8xf32> to vector<1x8xf32>
    %41 = vector.broadcast %39 : vector<8x1xf32> to vector<8x8xf32>
    %42 = vector.broadcast %40 : vector<1x8xf32> to vector<8x8xf32>
    %43 = arith.mulf %41, %42 : vector<8x8xf32>
    %44 = arith.mulf %43, %17 : vector<8x8xf32>
    %45 = arith.addf %15, %44 : vector<8x8xf32>
    %c0_21 = arith.constant 0 : index
    %c1 = arith.constant 1 : index
    %c0_22 = arith.constant 0 : index
    %c0_23 = arith.constant 0 : index
    %46 = vector.load %arg4[%c0_21, %c1, %c0_22, %c0_23] : memref<1x8x8x8xf32, #tpu.memory_space<vmem>>, vector<1x1x8x8xf32>
    %47 = vector.shape_cast %46 : vector<1x1x8x8xf32> to vector<8x8xf32>
    %48 = vector.extract_strided_slice %12 {offsets = [0, 1], sizes = [8, 1], strides = [1, 1]} : vector<8x32xf32> to vector<8x1xf32>
    %49 = vector.extract_strided_slice %10 {offsets = [1, 0], sizes = [1, 8], strides = [1, 1]} : vector<32x8xf32> to vector<1x8xf32>
    %50 = vector.broadcast %48 : vector<8x1xf32> to vector<8x8xf32>
    %51 = vector.broadcast %49 : vector<1x8xf32> to vector<8x8xf32>
    %52 = arith.mulf %50, %51 : vector<8x8xf32>
    %53 = arith.mulf %52, %47 : vector<8x8xf32>
    %54 = arith.addf %24, %53 : vector<8x8xf32>
    %55 = vector.extract_strided_slice %12 {offsets = [0, 9], sizes = [8, 1], strides = [1, 1]} : vector<8x32xf32> to vector<8x1xf32>
    %56 = vector.extract_strided_slice %10 {offsets = [9, 0], sizes = [1, 8], strides = [1, 1]} : vector<32x8xf32> to vector<1x8xf32>
    %57 = vector.broadcast %55 : vector<8x1xf32> to vector<8x8xf32>
    %58 = vector.broadcast %56 : vector<1x8xf32> to vector<8x8xf32>
    %59 = arith.mulf %57, %58 : vector<8x8xf32>
    %60 = arith.mulf %59, %47 : vector<8x8xf32>
    %61 = arith.addf %31, %60 : vector<8x8xf32>
    %62 = vector.extract_strided_slice %12 {offsets = [0, 17], sizes = [8, 1], strides = [1, 1]} : vector<8x32xf32> to vector<8x1xf32>
    %63 = vector.extract_strided_slice %10 {offsets = [17, 0], sizes = [1, 8], strides = [1, 1]} : vector<32x8xf32> to vector<1x8xf32>
    %64 = vector.broadcast %62 : vector<8x1xf32> to vector<8x8xf32>
    %65 = vector.broadcast %63 : vector<1x8xf32> to vector<8x8xf32>
    %66 = arith.mulf %64, %65 : vector<8x8xf32>
    %67 = arith.mulf %66, %47 : vector<8x8xf32>
    %68 = arith.addf %38, %67 : vector<8x8xf32>
    %69 = vector.extract_strided_slice %12 {offsets = [0, 25], sizes = [8, 1], strides = [1, 1]} : vector<8x32xf32> to vector<8x1xf32>
    %70 = vector.extract_strided_slice %10 {offsets = [25, 0], sizes = [1, 8], strides = [1, 1]} : vector<32x8xf32> to vector<1x8xf32>
    %71 = vector.broadcast %69 : vector<8x1xf32> to vector<8x8xf32>
    %72 = vector.broadcast %70 : vector<1x8xf32> to vector<8x8xf32>
    %73 = arith.mulf %71, %72 : vector<8x8xf32>
    %74 = arith.mulf %73, %47 : vector<8x8xf32>
    %75 = arith.addf %45, %74 : vector<8x8xf32>
    %c0_24 = arith.constant 0 : index
    %c2 = arith.constant 2 : index
    %c0_25 = arith.constant 0 : index
    %c0_26 = arith.constant 0 : index
    %76 = vector.load %arg4[%c0_24, %c2, %c0_25, %c0_26] : memref<1x8x8x8xf32, #tpu.memory_space<vmem>>, vector<1x1x8x8xf32>
    %77 = vector.shape_cast %76 : vector<1x1x8x8xf32> to vector<8x8xf32>
    %78 = vector.extract_strided_slice %12 {offsets = [0, 2], sizes = [8, 1], strides = [1, 1]} : vector<8x32xf32> to vector<8x1xf32>
    %79 = vector.extract_strided_slice %10 {offsets = [2, 0], sizes = [1, 8], strides = [1, 1]} : vector<32x8xf32> to vector<1x8xf32>
    %80 = vector.broadcast %78 : vector<8x1xf32> to vector<8x8xf32>
    %81 = vector.broadcast %79 : vector<1x8xf32> to vector<8x8xf32>
    %82 = arith.mulf %80, %81 : vector<8x8xf32>
    %83 = arith.mulf %82, %77 : vector<8x8xf32>
    %84 = arith.addf %54, %83 : vector<8x8xf32>
    %85 = vector.extract_strided_slice %12 {offsets = [0, 10], sizes = [8, 1], strides = [1, 1]} : vector<8x32xf32> to vector<8x1xf32>
    %86 = vector.extract_strided_slice %10 {offsets = [10, 0], sizes = [1, 8], strides = [1, 1]} : vector<32x8xf32> to vector<1x8xf32>
    %87 = vector.broadcast %85 : vector<8x1xf32> to vector<8x8xf32>
    %88 = vector.broadcast %86 : vector<1x8xf32> to vector<8x8xf32>
    %89 = arith.mulf %87, %88 : vector<8x8xf32>
    %90 = arith.mulf %89, %77 : vector<8x8xf32>
    %91 = arith.addf %61, %90 : vector<8x8xf32>
    %92 = vector.extract_strided_slice %12 {offsets = [0, 18], sizes = [8, 1], strides = [1, 1]} : vector<8x32xf32> to vector<8x1xf32>
    %93 = vector.extract_strided_slice %10 {offsets = [18, 0], sizes = [1, 8], strides = [1, 1]} : vector<32x8xf32> to vector<1x8xf32>
    %94 = vector.broadcast %92 : vector<8x1xf32> to vector<8x8xf32>
    %95 = vector.broadcast %93 : vector<1x8xf32> to vector<8x8xf32>
    %96 = arith.mulf %94, %95 : vector<8x8xf32>
    %97 = arith.mulf %96, %77 : vector<8x8xf32>
    %98 = arith.addf %68, %97 : vector<8x8xf32>
    %99 = vector.extract_strided_slice %12 {offsets = [0, 26], sizes = [8, 1], strides = [1, 1]} : vector<8x32xf32> to vector<8x1xf32>
    %100 = vector.extract_strided_slice %10 {offsets = [26, 0], sizes = [1, 8], strides = [1, 1]} : vector<32x8xf32> to vector<1x8xf32>
    %101 = vector.broadcast %99 : vector<8x1xf32> to vector<8x8xf32>
    %102 = vector.broadcast %100 : vector<1x8xf32> to vector<8x8xf32>
    %103 = arith.mulf %101, %102 : vector<8x8xf32>
    %104 = arith.mulf %103, %77 : vector<8x8xf32>
    %105 = arith.addf %75, %104 : vector<8x8xf32>
    %c0_27 = arith.constant 0 : index
    %c3 = arith.constant 3 : index
    %c0_28 = arith.constant 0 : index
    %c0_29 = arith.constant 0 : index
    %106 = vector.load %arg4[%c0_27, %c3, %c0_28, %c0_29] : memref<1x8x8x8xf32, #tpu.memory_space<vmem>>, vector<1x1x8x8xf32>
    %107 = vector.shape_cast %106 : vector<1x1x8x8xf32> to vector<8x8xf32>
    %108 = vector.extract_strided_slice %12 {offsets = [0, 3], sizes = [8, 1], strides = [1, 1]} : vector<8x32xf32> to vector<8x1xf32>
    %109 = vector.extract_strided_slice %10 {offsets = [3, 0], sizes = [1, 8], strides = [1, 1]} : vector<32x8xf32> to vector<1x8xf32>
    %110 = vector.broadcast %108 : vector<8x1xf32> to vector<8x8xf32>
    %111 = vector.broadcast %109 : vector<1x8xf32> to vector<8x8xf32>
    %112 = arith.mulf %110, %111 : vector<8x8xf32>
    %113 = arith.mulf %112, %107 : vector<8x8xf32>
    %114 = arith.addf %84, %113 : vector<8x8xf32>
    %115 = vector.extract_strided_slice %12 {offsets = [0, 11], sizes = [8, 1], strides = [1, 1]} : vector<8x32xf32> to vector<8x1xf32>
    %116 = vector.extract_strided_slice %10 {offsets = [11, 0], sizes = [1, 8], strides = [1, 1]} : vector<32x8xf32> to vector<1x8xf32>
    %117 = vector.broadcast %115 : vector<8x1xf32> to vector<8x8xf32>
    %118 = vector.broadcast %116 : vector<1x8xf32> to vector<8x8xf32>
    %119 = arith.mulf %117, %118 : vector<8x8xf32>
    %120 = arith.mulf %119, %107 : vector<8x8xf32>
    %121 = arith.addf %91, %120 : vector<8x8xf32>
    %122 = vector.extract_strided_slice %12 {offsets = [0, 19], sizes = [8, 1], strides = [1, 1]} : vector<8x32xf32> to vector<8x1xf32>
    %123 = vector.extract_strided_slice %10 {offsets = [19, 0], sizes = [1, 8], strides = [1, 1]} : vector<32x8xf32> to vector<1x8xf32>
    %124 = vector.broadcast %122 : vector<8x1xf32> to vector<8x8xf32>
    %125 = vector.broadcast %123 : vector<1x8xf32> to vector<8x8xf32>
    %126 = arith.mulf %124, %125 : vector<8x8xf32>
    %127 = arith.mulf %126, %107 : vector<8x8xf32>
    %128 = arith.addf %98, %127 : vector<8x8xf32>
    %129 = vector.extract_strided_slice %12 {offsets = [0, 27], sizes = [8, 1], strides = [1, 1]} : vector<8x32xf32> to vector<8x1xf32>
    %130 = vector.extract_strided_slice %10 {offsets = [27, 0], sizes = [1, 8], strides = [1, 1]} : vector<32x8xf32> to vector<1x8xf32>
    %131 = vector.broadcast %129 : vector<8x1xf32> to vector<8x8xf32>
    %132 = vector.broadcast %130 : vector<1x8xf32> to vector<8x8xf32>
    %133 = arith.mulf %131, %132 : vector<8x8xf32>
    %134 = arith.mulf %133, %107 : vector<8x8xf32>
    %135 = arith.addf %105, %134 : vector<8x8xf32>
    %c0_30 = arith.constant 0 : index
    %c4 = arith.constant 4 : index
    %c0_31 = arith.constant 0 : index
    %c0_32 = arith.constant 0 : index
    %136 = vector.load %arg4[%c0_30, %c4, %c0_31, %c0_32] : memref<1x8x8x8xf32, #tpu.memory_space<vmem>>, vector<1x1x8x8xf32>
    %137 = vector.shape_cast %136 : vector<1x1x8x8xf32> to vector<8x8xf32>
    %138 = vector.extract_strided_slice %12 {offsets = [0, 4], sizes = [8, 1], strides = [1, 1]} : vector<8x32xf32> to vector<8x1xf32>
    %139 = vector.extract_strided_slice %10 {offsets = [4, 0], sizes = [1, 8], strides = [1, 1]} : vector<32x8xf32> to vector<1x8xf32>
    %140 = vector.broadcast %138 : vector<8x1xf32> to vector<8x8xf32>
    %141 = vector.broadcast %139 : vector<1x8xf32> to vector<8x8xf32>
    %142 = arith.mulf %140, %141 : vector<8x8xf32>
    %143 = arith.mulf %142, %137 : vector<8x8xf32>
    %144 = arith.addf %114, %143 : vector<8x8xf32>
    %145 = vector.extract_strided_slice %12 {offsets = [0, 12], sizes = [8, 1], strides = [1, 1]} : vector<8x32xf32> to vector<8x1xf32>
    %146 = vector.extract_strided_slice %10 {offsets = [12, 0], sizes = [1, 8], strides = [1, 1]} : vector<32x8xf32> to vector<1x8xf32>
    %147 = vector.broadcast %145 : vector<8x1xf32> to vector<8x8xf32>
    %148 = vector.broadcast %146 : vector<1x8xf32> to vector<8x8xf32>
    %149 = arith.mulf %147, %148 : vector<8x8xf32>
    %150 = arith.mulf %149, %137 : vector<8x8xf32>
    %151 = arith.addf %121, %150 : vector<8x8xf32>
    %152 = vector.extract_strided_slice %12 {offsets = [0, 20], sizes = [8, 1], strides = [1, 1]} : vector<8x32xf32> to vector<8x1xf32>
    %153 = vector.extract_strided_slice %10 {offsets = [20, 0], sizes = [1, 8], strides = [1, 1]} : vector<32x8xf32> to vector<1x8xf32>
    %154 = vector.broadcast %152 : vector<8x1xf32> to vector<8x8xf32>
    %155 = vector.broadcast %153 : vector<1x8xf32> to vector<8x8xf32>
    %156 = arith.mulf %154, %155 : vector<8x8xf32>
    %157 = arith.mulf %156, %137 : vector<8x8xf32>
    %158 = arith.addf %128, %157 : vector<8x8xf32>
    %159 = vector.extract_strided_slice %12 {offsets = [0, 28], sizes = [8, 1], strides = [1, 1]} : vector<8x32xf32> to vector<8x1xf32>
    %160 = vector.extract_strided_slice %10 {offsets = [28, 0], sizes = [1, 8], strides = [1, 1]} : vector<32x8xf32> to vector<1x8xf32>
    %161 = vector.broadcast %159 : vector<8x1xf32> to vector<8x8xf32>
    %162 = vector.broadcast %160 : vector<1x8xf32> to vector<8x8xf32>
    %163 = arith.mulf %161, %162 : vector<8x8xf32>
    %164 = arith.mulf %163, %137 : vector<8x8xf32>
    %165 = arith.addf %135, %164 : vector<8x8xf32>
    %c0_33 = arith.constant 0 : index
    %c5 = arith.constant 5 : index
    %c0_34 = arith.constant 0 : index
    %c0_35 = arith.constant 0 : index
    %166 = vector.load %arg4[%c0_33, %c5, %c0_34, %c0_35] : memref<1x8x8x8xf32, #tpu.memory_space<vmem>>, vector<1x1x8x8xf32>
    %167 = vector.shape_cast %166 : vector<1x1x8x8xf32> to vector<8x8xf32>
    %168 = vector.extract_strided_slice %12 {offsets = [0, 5], sizes = [8, 1], strides = [1, 1]} : vector<8x32xf32> to vector<8x1xf32>
    %169 = vector.extract_strided_slice %10 {offsets = [5, 0], sizes = [1, 8], strides = [1, 1]} : vector<32x8xf32> to vector<1x8xf32>
    %170 = vector.broadcast %168 : vector<8x1xf32> to vector<8x8xf32>
    %171 = vector.broadcast %169 : vector<1x8xf32> to vector<8x8xf32>
    %172 = arith.mulf %170, %171 : vector<8x8xf32>
    %173 = arith.mulf %172, %167 : vector<8x8xf32>
    %174 = arith.addf %144, %173 : vector<8x8xf32>
    %175 = vector.extract_strided_slice %12 {offsets = [0, 13], sizes = [8, 1], strides = [1, 1]} : vector<8x32xf32> to vector<8x1xf32>
    %176 = vector.extract_strided_slice %10 {offsets = [13, 0], sizes = [1, 8], strides = [1, 1]} : vector<32x8xf32> to vector<1x8xf32>
    %177 = vector.broadcast %175 : vector<8x1xf32> to vector<8x8xf32>
    %178 = vector.broadcast %176 : vector<1x8xf32> to vector<8x8xf32>
    %179 = arith.mulf %177, %178 : vector<8x8xf32>
    %180 = arith.mulf %179, %167 : vector<8x8xf32>
    %181 = arith.addf %151, %180 : vector<8x8xf32>
    %182 = vector.extract_strided_slice %12 {offsets = [0, 21], sizes = [8, 1], strides = [1, 1]} : vector<8x32xf32> to vector<8x1xf32>
    %183 = vector.extract_strided_slice %10 {offsets = [21, 0], sizes = [1, 8], strides = [1, 1]} : vector<32x8xf32> to vector<1x8xf32>
    %184 = vector.broadcast %182 : vector<8x1xf32> to vector<8x8xf32>
    %185 = vector.broadcast %183 : vector<1x8xf32> to vector<8x8xf32>
    %186 = arith.mulf %184, %185 : vector<8x8xf32>
    %187 = arith.mulf %186, %167 : vector<8x8xf32>
    %188 = arith.addf %158, %187 : vector<8x8xf32>
    %189 = vector.extract_strided_slice %12 {offsets = [0, 29], sizes = [8, 1], strides = [1, 1]} : vector<8x32xf32> to vector<8x1xf32>
    %190 = vector.extract_strided_slice %10 {offsets = [29, 0], sizes = [1, 8], strides = [1, 1]} : vector<32x8xf32> to vector<1x8xf32>
    %191 = vector.broadcast %189 : vector<8x1xf32> to vector<8x8xf32>
    %192 = vector.broadcast %190 : vector<1x8xf32> to vector<8x8xf32>
    %193 = arith.mulf %191, %192 : vector<8x8xf32>
    %194 = arith.mulf %193, %167 : vector<8x8xf32>
    %195 = arith.addf %165, %194 : vector<8x8xf32>
    %c0_36 = arith.constant 0 : index
    %c6 = arith.constant 6 : index
    %c0_37 = arith.constant 0 : index
    %c0_38 = arith.constant 0 : index
    %196 = vector.load %arg4[%c0_36, %c6, %c0_37, %c0_38] : memref<1x8x8x8xf32, #tpu.memory_space<vmem>>, vector<1x1x8x8xf32>
    %197 = vector.shape_cast %196 : vector<1x1x8x8xf32> to vector<8x8xf32>
    %198 = vector.extract_strided_slice %12 {offsets = [0, 6], sizes = [8, 1], strides = [1, 1]} : vector<8x32xf32> to vector<8x1xf32>
    %199 = vector.extract_strided_slice %10 {offsets = [6, 0], sizes = [1, 8], strides = [1, 1]} : vector<32x8xf32> to vector<1x8xf32>
    %200 = vector.broadcast %198 : vector<8x1xf32> to vector<8x8xf32>
    %201 = vector.broadcast %199 : vector<1x8xf32> to vector<8x8xf32>
    %202 = arith.mulf %200, %201 : vector<8x8xf32>
    %203 = arith.mulf %202, %197 : vector<8x8xf32>
    %204 = arith.addf %174, %203 : vector<8x8xf32>
    %205 = vector.extract_strided_slice %12 {offsets = [0, 14], sizes = [8, 1], strides = [1, 1]} : vector<8x32xf32> to vector<8x1xf32>
    %206 = vector.extract_strided_slice %10 {offsets = [14, 0], sizes = [1, 8], strides = [1, 1]} : vector<32x8xf32> to vector<1x8xf32>
    %207 = vector.broadcast %205 : vector<8x1xf32> to vector<8x8xf32>
    %208 = vector.broadcast %206 : vector<1x8xf32> to vector<8x8xf32>
    %209 = arith.mulf %207, %208 : vector<8x8xf32>
    %210 = arith.mulf %209, %197 : vector<8x8xf32>
    %211 = arith.addf %181, %210 : vector<8x8xf32>
    %212 = vector.extract_strided_slice %12 {offsets = [0, 22], sizes = [8, 1], strides = [1, 1]} : vector<8x32xf32> to vector<8x1xf32>
    %213 = vector.extract_strided_slice %10 {offsets = [22, 0], sizes = [1, 8], strides = [1, 1]} : vector<32x8xf32> to vector<1x8xf32>
    %214 = vector.broadcast %212 : vector<8x1xf32> to vector<8x8xf32>
    %215 = vector.broadcast %213 : vector<1x8xf32> to vector<8x8xf32>
    %216 = arith.mulf %214, %215 : vector<8x8xf32>
    %217 = arith.mulf %216, %197 : vector<8x8xf32>
    %218 = arith.addf %188, %217 : vector<8x8xf32>
    %219 = vector.extract_strided_slice %12 {offsets = [0, 30], sizes = [8, 1], strides = [1, 1]} : vector<8x32xf32> to vector<8x1xf32>
    %220 = vector.extract_strided_slice %10 {offsets = [30, 0], sizes = [1, 8], strides = [1, 1]} : vector<32x8xf32> to vector<1x8xf32>
    %221 = vector.broadcast %219 : vector<8x1xf32> to vector<8x8xf32>
    %222 = vector.broadcast %220 : vector<1x8xf32> to vector<8x8xf32>
    %223 = arith.mulf %221, %222 : vector<8x8xf32>
    %224 = arith.mulf %223, %197 : vector<8x8xf32>
    %225 = arith.addf %195, %224 : vector<8x8xf32>
    %c0_39 = arith.constant 0 : index
    %c7 = arith.constant 7 : index
    %c0_40 = arith.constant 0 : index
    %c0_41 = arith.constant 0 : index
    %226 = vector.load %arg4[%c0_39, %c7, %c0_40, %c0_41] : memref<1x8x8x8xf32, #tpu.memory_space<vmem>>, vector<1x1x8x8xf32>
    %227 = vector.shape_cast %226 : vector<1x1x8x8xf32> to vector<8x8xf32>
    %228 = vector.extract_strided_slice %12 {offsets = [0, 7], sizes = [8, 1], strides = [1, 1]} : vector<8x32xf32> to vector<8x1xf32>
    %229 = vector.extract_strided_slice %10 {offsets = [7, 0], sizes = [1, 8], strides = [1, 1]} : vector<32x8xf32> to vector<1x8xf32>
    %230 = vector.broadcast %228 : vector<8x1xf32> to vector<8x8xf32>
    %231 = vector.broadcast %229 : vector<1x8xf32> to vector<8x8xf32>
    %232 = arith.mulf %230, %231 : vector<8x8xf32>
    %233 = arith.mulf %232, %227 : vector<8x8xf32>
    %234 = arith.addf %204, %233 : vector<8x8xf32>
    %235 = vector.extract_strided_slice %12 {offsets = [0, 15], sizes = [8, 1], strides = [1, 1]} : vector<8x32xf32> to vector<8x1xf32>
    %236 = vector.extract_strided_slice %10 {offsets = [15, 0], sizes = [1, 8], strides = [1, 1]} : vector<32x8xf32> to vector<1x8xf32>
    %237 = vector.broadcast %235 : vector<8x1xf32> to vector<8x8xf32>
    %238 = vector.broadcast %236 : vector<1x8xf32> to vector<8x8xf32>
    %239 = arith.mulf %237, %238 : vector<8x8xf32>
    %240 = arith.mulf %239, %227 : vector<8x8xf32>
    %241 = arith.addf %211, %240 : vector<8x8xf32>
    %242 = vector.extract_strided_slice %12 {offsets = [0, 23], sizes = [8, 1], strides = [1, 1]} : vector<8x32xf32> to vector<8x1xf32>
    %243 = vector.extract_strided_slice %10 {offsets = [23, 0], sizes = [1, 8], strides = [1, 1]} : vector<32x8xf32> to vector<1x8xf32>
    %244 = vector.broadcast %242 : vector<8x1xf32> to vector<8x8xf32>
    %245 = vector.broadcast %243 : vector<1x8xf32> to vector<8x8xf32>
    %246 = arith.mulf %244, %245 : vector<8x8xf32>
    %247 = arith.mulf %246, %227 : vector<8x8xf32>
    %248 = arith.addf %218, %247 : vector<8x8xf32>
    %249 = vector.extract_strided_slice %12 {offsets = [0, 31], sizes = [8, 1], strides = [1, 1]} : vector<8x32xf32> to vector<8x1xf32>
    %250 = vector.extract_strided_slice %10 {offsets = [31, 0], sizes = [1, 8], strides = [1, 1]} : vector<32x8xf32> to vector<1x8xf32>
    %251 = vector.broadcast %249 : vector<8x1xf32> to vector<8x8xf32>
    %252 = vector.broadcast %250 : vector<1x8xf32> to vector<8x8xf32>
    %253 = arith.mulf %251, %252 : vector<8x8xf32>
    %254 = arith.mulf %253, %227 : vector<8x8xf32>
    %255 = arith.addf %225, %254 : vector<8x8xf32>
    %cst_42 = arith.constant 0.000000e+00 : f32
    %256 = vector.broadcast %cst_42 : f32 to vector<8x32xf32>
    %cst_43 = arith.constant dense<0xFF800000> : vector<8xf32>
    %257 = vector.multi_reduction <maximumf>, %234, %cst_43 [1] : vector<8x8xf32> to vector<8xf32>
    %258 = vector.shape_cast %257 : vector<8xf32> to vector<8x1xf32>
    %259 = vector.broadcast %258 : vector<8x1xf32> to vector<8x8xf32>
    %260 = arith.subf %234, %259 : vector<8x8xf32>
    %261 = math.exp %260 : vector<8x8xf32>
    %cst_44 = arith.constant dense<0.000000e+00> : vector<8xf32>
    %262 = vector.multi_reduction <add>, %261, %cst_44 [1] : vector<8x8xf32> to vector<8xf32>
    %263 = vector.shape_cast %262 : vector<8xf32> to vector<8x1xf32>
    %264 = tpu.reciprocal %263 {approx = true} : vector<8x1xf32> -> vector<8x1xf32>
    %265 = vector.broadcast %264 : vector<8x1xf32> to vector<8x8xf32>
    %266 = arith.mulf %261, %265 : vector<8x8xf32>
    %267 = vector.extract_strided_slice %14 {offsets = [0, 0], sizes = [8, 8], strides = [1, 1]} : vector<8x32xf32> to vector<8x8xf32>
    %cst_45 = arith.constant dense<0.000000e+00> : vector<8x8xf32>
    %268 = tpu.matmul %266, %267, %cst_45 {dimension_numbers = #tpu.dot_dimension_numbers<[1], [0], [0], [1], [0, 0, 1, 1], [], []>} : vector<8x8xf32>, vector<8x8xf32>, vector<8x8xf32> -> vector<8x8xf32>
    %c0_46 = arith.constant 0 : index
    %c0_47 = arith.constant 0 : index
    %269 = vector.load %arg9[%c0_46, %c0_47] : memref<32x32xf32, #tpu.memory_space<vmem>>, vector<8x32xf32>
    %cst_48 = arith.constant dense<0.000000e+00> : vector<8x32xf32>
    %270 = tpu.matmul %268, %269, %cst_48 {dimension_numbers = #tpu.dot_dimension_numbers<[1], [0], [0], [1], [0, 0, 1, 1], [], []>} : vector<8x8xf32>, vector<8x32xf32>, vector<8x32xf32> -> vector<8x32xf32>
    %271 = arith.addf %256, %270 : vector<8x32xf32>
    %cst_49 = arith.constant dense<0xFF800000> : vector<8xf32>
    %272 = vector.multi_reduction <maximumf>, %241, %cst_49 [1] : vector<8x8xf32> to vector<8xf32>
    %273 = vector.shape_cast %272 : vector<8xf32> to vector<8x1xf32>
    %274 = vector.broadcast %273 : vector<8x1xf32> to vector<8x8xf32>
    %275 = arith.subf %241, %274 : vector<8x8xf32>
    %276 = math.exp %275 : vector<8x8xf32>
    %cst_50 = arith.constant dense<0.000000e+00> : vector<8xf32>
    %277 = vector.multi_reduction <add>, %276, %cst_50 [1] : vector<8x8xf32> to vector<8xf32>
    %278 = vector.shape_cast %277 : vector<8xf32> to vector<8x1xf32>
    %279 = tpu.reciprocal %278 {approx = true} : vector<8x1xf32> -> vector<8x1xf32>
    %280 = vector.broadcast %279 : vector<8x1xf32> to vector<8x8xf32>
    %281 = arith.mulf %276, %280 : vector<8x8xf32>
    %282 = vector.extract_strided_slice %14 {offsets = [0, 8], sizes = [8, 8], strides = [1, 1]} : vector<8x32xf32> to vector<8x8xf32>
    %cst_51 = arith.constant dense<0.000000e+00> : vector<8x8xf32>
    %283 = tpu.matmul %281, %282, %cst_51 {dimension_numbers = #tpu.dot_dimension_numbers<[1], [0], [0], [1], [0, 0, 1, 1], [], []>} : vector<8x8xf32>, vector<8x8xf32>, vector<8x8xf32> -> vector<8x8xf32>
    %c8 = arith.constant 8 : index
    %c0_52 = arith.constant 0 : index
    %284 = vector.load %arg9[%c8, %c0_52] : memref<32x32xf32, #tpu.memory_space<vmem>>, vector<8x32xf32>
    %cst_53 = arith.constant dense<0.000000e+00> : vector<8x32xf32>
    %285 = tpu.matmul %283, %284, %cst_53 {dimension_numbers = #tpu.dot_dimension_numbers<[1], [0], [0], [1], [0, 0, 1, 1], [], []>} : vector<8x8xf32>, vector<8x32xf32>, vector<8x32xf32> -> vector<8x32xf32>
    %286 = arith.addf %271, %285 : vector<8x32xf32>
    %cst_54 = arith.constant dense<0xFF800000> : vector<8xf32>
    %287 = vector.multi_reduction <maximumf>, %248, %cst_54 [1] : vector<8x8xf32> to vector<8xf32>
    %288 = vector.shape_cast %287 : vector<8xf32> to vector<8x1xf32>
    %289 = vector.broadcast %288 : vector<8x1xf32> to vector<8x8xf32>
    %290 = arith.subf %248, %289 : vector<8x8xf32>
    %291 = math.exp %290 : vector<8x8xf32>
    %cst_55 = arith.constant dense<0.000000e+00> : vector<8xf32>
    %292 = vector.multi_reduction <add>, %291, %cst_55 [1] : vector<8x8xf32> to vector<8xf32>
    %293 = vector.shape_cast %292 : vector<8xf32> to vector<8x1xf32>
    %294 = tpu.reciprocal %293 {approx = true} : vector<8x1xf32> -> vector<8x1xf32>
    %295 = vector.broadcast %294 : vector<8x1xf32> to vector<8x8xf32>
    %296 = arith.mulf %291, %295 : vector<8x8xf32>
    %297 = vector.extract_strided_slice %14 {offsets = [0, 16], sizes = [8, 8], strides = [1, 1]} : vector<8x32xf32> to vector<8x8xf32>
    %cst_56 = arith.constant dense<0.000000e+00> : vector<8x8xf32>
    %298 = tpu.matmul %296, %297, %cst_56 {dimension_numbers = #tpu.dot_dimension_numbers<[1], [0], [0], [1], [0, 0, 1, 1], [], []>} : vector<8x8xf32>, vector<8x8xf32>, vector<8x8xf32> -> vector<8x8xf32>
    %c16 = arith.constant 16 : index
    %c0_57 = arith.constant 0 : index
    %299 = vector.load %arg9[%c16, %c0_57] : memref<32x32xf32, #tpu.memory_space<vmem>>, vector<8x32xf32>
    %cst_58 = arith.constant dense<0.000000e+00> : vector<8x32xf32>
    %300 = tpu.matmul %298, %299, %cst_58 {dimension_numbers = #tpu.dot_dimension_numbers<[1], [0], [0], [1], [0, 0, 1, 1], [], []>} : vector<8x8xf32>, vector<8x32xf32>, vector<8x32xf32> -> vector<8x32xf32>
    %301 = arith.addf %286, %300 : vector<8x32xf32>
    %cst_59 = arith.constant dense<0xFF800000> : vector<8xf32>
    %302 = vector.multi_reduction <maximumf>, %255, %cst_59 [1] : vector<8x8xf32> to vector<8xf32>
    %303 = vector.shape_cast %302 : vector<8xf32> to vector<8x1xf32>
    %304 = vector.broadcast %303 : vector<8x1xf32> to vector<8x8xf32>
    %305 = arith.subf %255, %304 : vector<8x8xf32>
    %306 = math.exp %305 : vector<8x8xf32>
    %cst_60 = arith.constant dense<0.000000e+00> : vector<8xf32>
    %307 = vector.multi_reduction <add>, %306, %cst_60 [1] : vector<8x8xf32> to vector<8xf32>
    %308 = vector.shape_cast %307 : vector<8xf32> to vector<8x1xf32>
    %309 = tpu.reciprocal %308 {approx = true} : vector<8x1xf32> -> vector<8x1xf32>
    %310 = vector.broadcast %309 : vector<8x1xf32> to vector<8x8xf32>
    %311 = arith.mulf %306, %310 : vector<8x8xf32>
    %312 = vector.extract_strided_slice %14 {offsets = [0, 24], sizes = [8, 8], strides = [1, 1]} : vector<8x32xf32> to vector<8x8xf32>
    %cst_61 = arith.constant dense<0.000000e+00> : vector<8x8xf32>
    %313 = tpu.matmul %311, %312, %cst_61 {dimension_numbers = #tpu.dot_dimension_numbers<[1], [0], [0], [1], [0, 0, 1, 1], [], []>} : vector<8x8xf32>, vector<8x8xf32>, vector<8x8xf32> -> vector<8x8xf32>
    %c24 = arith.constant 24 : index
    %c0_62 = arith.constant 0 : index
    %314 = vector.load %arg9[%c24, %c0_62] : memref<32x32xf32, #tpu.memory_space<vmem>>, vector<8x32xf32>
    %cst_63 = arith.constant dense<0.000000e+00> : vector<8x32xf32>
    %315 = tpu.matmul %313, %314, %cst_63 {dimension_numbers = #tpu.dot_dimension_numbers<[1], [0], [0], [1], [0, 0, 1, 1], [], []>} : vector<8x8xf32>, vector<8x32xf32>, vector<8x32xf32> -> vector<8x32xf32>
    %316 = arith.addf %301, %315 : vector<8x32xf32>
    %c0_64 = arith.constant 0 : index
    %c0_65 = arith.constant 0 : index
    %317 = vector.load %arg10[%c0_64, %c0_65] : memref<1x32xf32, #tpu.memory_space<vmem>>, vector<1x32xf32>
    %318 = vector.broadcast %317 : vector<1x32xf32> to vector<8x32xf32>
    %319 = arith.addf %316, %318 : vector<8x32xf32>
    %320 = arith.addf %319, %6 : vector<8x32xf32>
    %cst_66 = arith.constant dense<0.000000e+00> : vector<8xf32>
    %321 = vector.multi_reduction <add>, %320, %cst_66 [1] : vector<8x32xf32> to vector<8xf32>
    %322 = vector.shape_cast %321 : vector<8xf32> to vector<8x1xf32>
    %cst_67 = arith.constant 3.200000e+01 : f32
    %323 = vector.broadcast %cst_67 : f32 to vector<8x1xf32>
    %324 = arith.divf %322, %323 : vector<8x1xf32>
    %325 = vector.broadcast %324 : vector<8x1xf32> to vector<8x32xf32>
    %326 = arith.subf %320, %325 : vector<8x32xf32>
    %327 = arith.mulf %326, %326 : vector<8x32xf32>
    %cst_68 = arith.constant dense<0.000000e+00> : vector<8xf32>
    %328 = vector.multi_reduction <add>, %327, %cst_68 [1] : vector<8x32xf32> to vector<8xf32>
    %329 = vector.shape_cast %328 : vector<8xf32> to vector<8x1xf32>
    %cst_69 = arith.constant 3.200000e+01 : f32
    %330 = vector.broadcast %cst_69 : f32 to vector<8x1xf32>
    %331 = arith.divf %329, %330 : vector<8x1xf32>
    %332 = vector.broadcast %324 : vector<8x1xf32> to vector<8x32xf32>
    %333 = arith.subf %320, %332 : vector<8x32xf32>
    %cst_70 = arith.constant 9.99999997E-7 : f32
    %334 = vector.broadcast %cst_70 : f32 to vector<8x1xf32>
    %335 = arith.addf %331, %334 : vector<8x1xf32>
    %336 = math.rsqrt %335 : vector<8x1xf32>
    %337 = vector.broadcast %336 : vector<8x1xf32> to vector<8x32xf32>
    %338 = arith.mulf %333, %337 : vector<8x32xf32>
    %c0_71 = arith.constant 0 : index
    %c0_72 = arith.constant 0 : index
    %339 = vector.load %arg11[%c0_71, %c0_72] : memref<1x32xf32, #tpu.memory_space<vmem>>, vector<1x32xf32>
    %340 = vector.broadcast %339 : vector<1x32xf32> to vector<8x32xf32>
    %341 = arith.mulf %338, %340 : vector<8x32xf32>
    %c0_73 = arith.constant 0 : index
    %c0_74 = arith.constant 0 : index
    %342 = vector.load %arg12[%c0_73, %c0_74] : memref<1x32xf32, #tpu.memory_space<vmem>>, vector<1x32xf32>
    %343 = vector.broadcast %342 : vector<1x32xf32> to vector<8x32xf32>
    %344 = arith.addf %341, %343 : vector<8x32xf32>
    %c0_75 = arith.constant 0 : index
    %c0_76 = arith.constant 0 : index
    %c0_77 = arith.constant 0 : index
    %345 = vector.load %arg13[%c0_75, %c0_76, %c0_77] : memref<1x8x32xf32, #tpu.memory_space<vmem>>, vector<1x8x32xf32>
    %346 = vector.shape_cast %345 : vector<1x8x32xf32> to vector<8x32xf32>
    %347 = vector.shape_cast %344 : vector<8x32xf32> to vector<1x8x32xf32>
    tpu.vector_store %arg13[%c0_75, %c0_76, %c0_77], %347 {strides = array<i32>} : memref<1x8x32xf32, #tpu.memory_space<vmem>>, vector<1x8x32xf32>,
    return
  }
  func.func @transform_0(%arg0: i32, %arg1: i32) -> (i32, i32, i32) {
    %c0_i32 = arith.constant 0 : i32
    %c0_i32_0 = arith.constant 0 : i32
    %c0_i32_1 = arith.constant 0 : i32
    return %arg0, %c0_i32, %c0_i32_0 : i32, i32, i32
  }
  func.func @transform_1(%arg0: i32, %arg1: i32) -> (i32, i32, i32) {
    %c0_i32 = arith.constant 0 : i32
    %c0_i32_0 = arith.constant 0 : i32
    %c0_i32_1 = arith.constant 0 : i32
    return %arg0, %c0_i32, %c0_i32_0 : i32, i32, i32
  }
  func.func @transform_2(%arg0: i32, %arg1: i32) -> (i32, i32, i32, i32) {
    %c0_i32 = arith.constant 0 : i32
    %c0_i32_0 = arith.constant 0 : i32
    %c0_i32_1 = arith.constant 0 : i32
    return %arg0, %c0_i32, %arg1, %c0_i32_0 : i32, i32, i32, i32
  }
  func.func @transform_3(%arg0: i32, %arg1: i32) -> (i32, i32) {
    %c0_i32 = arith.constant 0 : i32
    %c0_i32_0 = arith.constant 0 : i32
    return %arg1, %c0_i32 : i32, i32
  }
  func.func @transform_4(%arg0: i32, %arg1: i32) -> (i32, i32) {
    %c0_i32 = arith.constant 0 : i32
    %c0_i32_0 = arith.constant 0 : i32
    %c0_i32_1 = arith.constant 0 : i32
    return %c0_i32, %c0_i32_0 : i32, i32
  }
  func.func @transform_5(%arg0: i32, %arg1: i32) -> (i32, i32) {
    %c0_i32 = arith.constant 0 : i32
    %c0_i32_0 = arith.constant 0 : i32
    %c0_i32_1 = arith.constant 0 : i32
    return %c0_i32, %c0_i32_0 : i32, i32
  }
  func.func @transform_6(%arg0: i32, %arg1: i32) -> (i32, i32) {
    %c0_i32 = arith.constant 0 : i32
    %c0_i32_0 = arith.constant 0 : i32
    %c0_i32_1 = arith.constant 0 : i32
    return %c0_i32, %c0_i32_0 : i32, i32
  }
  func.func @transform_7(%arg0: i32, %arg1: i32) -> (i32, i32) {
    %c0_i32 = arith.constant 0 : i32
    %c0_i32_0 = arith.constant 0 : i32
    %c0_i32_1 = arith.constant 0 : i32
    return %c0_i32, %c0_i32_0 : i32, i32
  }
  func.func @transform_8(%arg0: i32, %arg1: i32) -> (i32, i32) {
    %c0_i32 = arith.constant 0 : i32
    %c0_i32_0 = arith.constant 0 : i32
    %c0_i32_1 = arith.constant 0 : i32
    return %c0_i32, %c0_i32_0 : i32, i32
  }
  func.func @transform_9(%arg0: i32, %arg1: i32) -> (i32, i32) {
    %c0_i32 = arith.constant 0 : i32
    %c0_i32_0 = arith.constant 0 : i32
    %c0_i32_1 = arith.constant 0 : i32
    return %c0_i32, %c0_i32_0 : i32, i32
  }
  func.func @transform_10(%arg0: i32, %arg1: i32) -> (i32, i32) {
    %c0_i32 = arith.constant 0 : i32
    %c0_i32_0 = arith.constant 0 : i32
    %c0_i32_1 = arith.constant 0 : i32
    return %c0_i32, %c0_i32_0 : i32, i32
  }
  func.func @transform_11(%arg0: i32, %arg1: i32) -> (i32, i32, i32) {
    %c0_i32 = arith.constant 0 : i32
    %c0_i32_0 = arith.constant 0 : i32
    return %arg0, %arg1, %c0_i32 : i32, i32, i32
  }
}

</mosaic_0001>

<llo_original>
// kernel: tpu_custom_call.1
$region0: #{tpu_custom_call.1}
  #allocation0 [shape = 'u32[]', space=smem, size = 0x4, offset = 0x4, fixed_abs, tag = 'smem constant byte address 0x4 - core index']
  #allocation1 [shape = 'u32[144,128]{1,0:T(1,128)}', space=vmem, size = 0x12000, scoped, tag = 'internal scratch']
  %s0 = inlined_call_operand.vmem [shape: f32[2,8,32], index: 0, kind: input, shape index: {}]
  %s1 = inlined_call_operand.vmem [shape: f32[2,32,8], index: 1, kind: input, shape index: {}]
  %s2 = inlined_call_operand.hbm [shape: f32[2,8,8,8], index: 2, kind: input, shape index: {}]
  %s3 = inlined_call_operand.hbm [shape: f32[8,8], index: 3, kind: input, shape index: {}]
  %s4 = inlined_call_operand.vmem [shape: f32[32,32], index: 4, kind: input, shape index: {}]
  %s5 = inlined_call_operand.vmem [shape: f32[32,32], index: 5, kind: input, shape index: {}]
  %s6 = inlined_call_operand.hbm [shape: f32[32,32], index: 6, kind: input, shape index: {}]
  %s7 = inlined_call_operand.hbm [shape: f32[32,32], index: 7, kind: input, shape index: {}]
  %s8 = inlined_call_operand.vmem [shape: f32[1,32], index: 8, kind: input, shape index: {}]
  %s9 = inlined_call_operand.vmem [shape: f32[1,32], index: 9, kind: input, shape index: {}]
  %s10 = inlined_call_operand.vmem [shape: f32[1,32], index: 10, kind: input, shape index: {}]
  %s11 = inlined_call_operand.hbm [shape: f32[2,8,32], index: 11, kind: output, shape index: {}]
  %s12 = sld [smem:[#allocation0]]
  $region93: #{tpu_custom_call.1} parent=0
    _
  %s14 = ssub.s32 1, %s12
  %s15 = scalar_select 0, %s14, %s12
  $region1: #{tpu_custom_call.1} parent=0
    #allocation2 [shape = 'u8[65536]{0}', space=vmem, size = 0x10000, scoped, tag = 'input window, operand 2']
    #allocation3 [shape = 's32[2]{0}', space=sflag, size = 0x8, scoped, tag = 'scoped memory for tpu_custom_call.1']
    #allocation4 [shape = 's32[2]{0}', space=sflag, size = 0x8, scoped, tag = 'scoped memory for tpu_custom_call.1']
    #allocation5 [shape = 'u8[4096]{0}', space=vmem, size = 0x1000, scoped, tag = 'input window, operand 3, single buffered']
    #allocation6 [shape = 's32[1]{0}', space=sflag, size = 0x4, scoped, tag = 'scoped memory for tpu_custom_call.1']
    #allocation7 [shape = 'u8[16384]{0}', space=vmem, size = 0x4000, scoped, tag = 'input window, operand 6, single buffered']
    #allocation8 [shape = 'u8[16384]{0}', space=vmem, size = 0x4000, scoped, tag = 'input window, operand 7, single buffered']
    #allocation9 [shape = 's32[1]{0}', space=sflag, size = 0x4, scoped, tag = 'scoped memory for tpu_custom_call.1']
    #allocation10 [shape = 'u8[8192]{0}', space=vmem, size = 0x2000, scoped, tag = 'output window, operand 0']
    %16 = vsyncpa [#allocation3], 0
    %s17 = scalar_lea.sflag [#allocation3], 1
    %18 = vsyncpa %s17, 0
    %19 = vsyncpa [#allocation6], 0
    %20 = vsyncpa [#allocation9], 0
    %21 = vsyncpa [#allocation4], 0
    %s22 = scalar_lea.sflag [#allocation4], 1
    %23 = vsyncpa %s22, 0
    loop: start=0, step=1, limit=4
    $region2: #{tpu_custom_call.1} parent=1 // loop_pre_header
      _
    $region3: #{tpu_custom_call.1} parent=1 // loop_header
      %s25 = sphi 0, %s29
      %p26 = scmp.ge.s32.totalorder %s25, 4
      %s32 = sphi 0, %s44
      %s33 = sphi 0, %s40
      %s34 = sphi 0, %s32
      %s35 = sphi 0, %s33
      %s36 = sphi 0, %s34
      %s37 = sphi 0, %s35
      %s47 = sphi 0, %s49
      %s50 = sphi 0, %s47
      %s51 = sphi 0, %s50
      %s67 = sphi 0, %s51
      %s73 = sphi 0, %s75
      %s76 = sphi 0, %s73
      %s77 = sphi 0, %s76
      %s93 = sphi 0, %s77
      %s101 = sphi 0, %s103
      %s104 = sphi 0, %s101
      %s105 = sphi 0, %s104
      %s121 = sphi 0, %s105
      %s127 = sphi 0, %s129
      %s130 = sphi 0, %s127
      %s131 = sphi 0, %s130
      %s147 = sphi 0, %s131
      %s151 = sphi 0, %s151
      %s153 = sphi 0, %s151
      %s154 = sphi 0, %s153
      %s168 = sphi 0, %s154
      %s172 = sphi 0, %s172
      %s174 = sphi 0, %s172
      %s175 = sphi 0, %s174
      %s189 = sphi 0, %s175
      %s193 = sphi 0, %s193
      %s195 = sphi 0, %s193
      %s196 = sphi 0, %s195
      %s210 = sphi 0, %s196
      %s214 = sphi 0, %s214
      %s216 = sphi 0, %s214
      %s217 = sphi 0, %s216
      %s231 = sphi 0, %s217
      %s235 = sphi 0, %s235
      %s237 = sphi 0, %s235
      %s238 = sphi 0, %s237
      %s252 = sphi 0, %s238
      %s256 = sphi 0, %s256
      %s258 = sphi 0, %s256
      %s259 = sphi 0, %s258
      %s273 = sphi 0, %s259
      %s277 = sphi 0, %s277
      %s279 = sphi 0, %s277
      %s280 = sphi 0, %s279
      %s294 = sphi 0, %s280
      %s302 = sphi 0, %s304
      %s305 = sphi 0, %s302
      %s306 = sphi 0, %s305
      %s322 = sphi 0, %s306
    $region4: #{tpu_custom_call.1} parent=1 // loop_header_branch
      %28 = sbr.rel (%p26) target = $region8
    $region5: #{tpu_custom_call.1} parent=1 // loop_body
      %s30 = ssub.s32 %s25, 1
      %s31 = ssub.s32 %s25, 2
      %s38 = sadd.s32 1, %s33
      %p39 = scmp.ge.s32.totalorder %s38, 1
      %s40 = scalar_select %p39, 0, %s38
      %s41 = sadd.s32 1, %s32
      %s42 = scalar_select %p39, %s41, %s32
      %p43 = scmp.ge.s32.totalorder %s42, 2
      %s44 = scalar_select %p43, 0, %s42
      %s45 = ssub.s32 %s32, %s44
      %p46 = scmp.eq.s32.totalorder %s45, 0
      %s48 = sadd.s32 %s47, 1
      %s49 = scalar_select %p46, %s47, %s48
      %p52 = pneg %p46
      %p53 = scmp.eq.s32.totalorder %s25, 1
      %p54 = por %p52, %p53
      %p55 = scmp.ne.s32.totalorder %s47, %s50
      %p56 = scmp.eq.s32.totalorder %s25, 0
      %p57 = por %p55, %p56
      %p58 = scmp.ne.s32.totalorder %s47, %s50
      %p59 = scmp.eq.s32.totalorder %s30, 1
      %p60 = por %p58, %p59
      %p61 = scmp.ne.s32.totalorder %s50, %s51
      %p62 = scmp.eq.s32.totalorder %s30, 0
      %p63 = por %p61, %p62
      %p64 = scmp.ne.s32.totalorder %s50, %s51
      %p65 = scmp.eq.s32.totalorder %s31, 1
      %p66 = por %p64, %p65
      %p68 = scmp.ne.s32.totalorder %s51, %s67
      %p69 = scmp.eq.s32.totalorder %s31, 0
      %p70 = por %p68, %p69
      %s71 = ssub.s32 %s32, %s44
      %p72 = scmp.eq.s32.totalorder %s71, 0
      %s74 = sadd.s32 %s73, 1
      %s75 = scalar_select %p72, %s73, %s74
      %p78 = pneg %p72
      %p79 = scmp.eq.s32.totalorder %s25, 1
      %p80 = por %p78, %p79
      %p81 = scmp.ne.s32.totalorder %s73, %s76
      %p82 = scmp.eq.s32.totalorder %s25, 0
      %p83 = por %p81, %p82
      %p84 = scmp.ne.s32.totalorder %s73, %s76
      %p85 = scmp.eq.s32.totalorder %s30, 1
      %p86 = por %p84, %p85
      %p87 = scmp.ne.s32.totalorder %s76, %s77
      %p88 = scmp.eq.s32.totalorder %s30, 0
      %p89 = por %p87, %p88
      %p90 = scmp.ne.s32.totalorder %s76, %s77
      %p91 = scmp.eq.s32.totalorder %s31, 1
      %p92 = por %p90, %p91
      %p94 = scmp.ne.s32.totalorder %s77, %s93
      %p95 = scmp.eq.s32.totalorder %s31, 0
      %p96 = por %p94, %p95
      %s97 = ssub.s32 %s32, %s44
      %s98 = ssub.s32 %s33, %s40
      %s99 = sor.u32 %s97, %s98
      %p100 = scmp.eq.s32.totalorder %s99, 0
      %s102 = sadd.s32 %s101, 1
      %s103 = scalar_select %p100, %s101, %s102
      %p106 = pneg %p100
      %p107 = scmp.eq.s32.totalorder %s25, 1
      %p108 = por %p106, %p107
      %p109 = scmp.ne.s32.totalorder %s101, %s104
      %p110 = scmp.eq.s32.totalorder %s25, 0
      %p111 = por %p109, %p110
      %p112 = scmp.ne.s32.totalorder %s101, %s104
      %p113 = scmp.eq.s32.totalorder %s30, 1
      %p114 = por %p112, %p113
      %p115 = scmp.ne.s32.totalorder %s104, %s105
      %p116 = scmp.eq.s32.totalorder %s30, 0
      %p117 = por %p115, %p116
      %p118 = scmp.ne.s32.totalorder %s104, %s105
      %p119 = scmp.eq.s32.totalorder %s31, 1
      %p120 = por %p118, %p119
      %p122 = scmp.ne.s32.totalorder %s105, %s121
      %p123 = scmp.eq.s32.totalorder %s31, 0
      %p124 = por %p122, %p123
      %s125 = ssub.s32 %s33, %s40
      %p126 = scmp.eq.s32.totalorder %s125, 0
      %s128 = sadd.s32 %s127, 1
      %s129 = scalar_select %p126, %s127, %s128
      %p132 = pneg %p126
      %p133 = scmp.eq.s32.totalorder %s25, 1
      %p134 = por %p132, %p133
      %p135 = scmp.ne.s32.totalorder %s127, %s130
      %p136 = scmp.eq.s32.totalorder %s25, 0
      %p137 = por %p135, %p136
      %p138 = scmp.ne.s32.totalorder %s127, %s130
      %p139 = scmp.eq.s32.totalorder %s30, 1
      %p140 = por %p138, %p139
      %p141 = scmp.ne.s32.totalorder %s130, %s131
      %p142 = scmp.eq.s32.totalorder %s30, 0
      %p143 = por %p141, %p142
      %p144 = scmp.ne.s32.totalorder %s130, %s131
      %p145 = scmp.eq.s32.totalorder %s31, 1
      %p146 = por %p144, %p145
      %p148 = scmp.ne.s32.totalorder %s131, %s147
      %p149 = scmp.eq.s32.totalorder %s31, 0
      %p150 = por %p148, %p149
      %s152 = sadd.s32 %s151, 1
      %p155 = scmp.eq.s32.totalorder %s25, 1
      %p156 = scmp.ne.s32.totalorder %s151, %s153
      %p157 = scmp.eq.s32.totalorder %s25, 0
      %p158 = por %p156, %p157
      %p159 = scmp.ne.s32.totalorder %s151, %s153
      %p160 = scmp.eq.s32.totalorder %s30, 1
      %p161 = por %p159, %p160
      %p162 = scmp.ne.s32.totalorder %s153, %s154
      %p163 = scmp.eq.s32.totalorder %s30, 0
      %p164 = por %p162, %p163
      %p165 = scmp.ne.s32.totalorder %s153, %s154
      %p166 = scmp.eq.s32.totalorder %s31, 1
      %p167 = por %p165, %p166
      %p169 = scmp.ne.s32.totalorder %s154, %s168
      %p170 = scmp.eq.s32.totalorder %s31, 0
      %p171 = por %p169, %p170
      %s173 = sadd.s32 %s172, 1
      %p176 = scmp.eq.s32.totalorder %s25, 1
      %p177 = scmp.ne.s32.totalorder %s172, %s174
      %p178 = scmp.eq.s32.totalorder %s25, 0
      %p179 = por %p177, %p178
      %p180 = scmp.ne.s32.totalorder %s172, %s174
      %p181 = scmp.eq.s32.totalorder %s30, 1
      %p182 = por %p180, %p181
      %p183 = scmp.ne.s32.totalorder %s174, %s175
      %p184 = scmp.eq.s32.totalorder %s30, 0
      %p185 = por %p183, %p184
      %p186 = scmp.ne.s32.totalorder %s174, %s175
      %p187 = scmp.eq.s32.totalorder %s31, 1
      %p188 = por %p186, %p187
      %p190 = scmp.ne.s32.totalorder %s175, %s189
      %p191 = scmp.eq.s32.totalorder %s31, 0
      %p192 = por %p190, %p191
      %s194 = sadd.s32 %s193, 1
      %p197 = scmp.eq.s32.totalorder %s25, 1
      %p198 = scmp.ne.s32.totalorder %s193, %s195
      %p199 = scmp.eq.s32.totalorder %s25, 0
      %p200 = por %p198, %p199
      %p201 = scmp.ne.s32.totalorder %s193, %s195
      %p202 = scmp.eq.s32.totalorder %s30, 1
      %p203 = por %p201, %p202
      %p204 = scmp.ne.s32.totalorder %s195, %s196
      %p205 = scmp.eq.s32.totalorder %s30, 0
      %p206 = por %p204, %p205
      %p207 = scmp.ne.s32.totalorder %s195, %s196
      %p208 = scmp.eq.s32.totalorder %s31, 1
      %p209 = por %p207, %p208
      %p211 = scmp.ne.s32.totalorder %s196, %s210
      %p212 = scmp.eq.s32.totalorder %s31, 0
      %p213 = por %p211, %p212
      %s215 = sadd.s32 %s214, 1
      %p218 = scmp.eq.s32.totalorder %s25, 1
      %p219 = scmp.ne.s32.totalorder %s214, %s216
      %p220 = scmp.eq.s32.totalorder %s25, 0
      %p221 = por %p219, %p220
      %p222 = scmp.ne.s32.totalorder %s214, %s216
      %p223 = scmp.eq.s32.totalorder %s30, 1
      %p224 = por %p222, %p223
      %p225 = scmp.ne.s32.totalorder %s216, %s217
      %p226 = scmp.eq.s32.totalorder %s30, 0
      %p227 = por %p225, %p226
      %p228 = scmp.ne.s32.totalorder %s216, %s217
      %p229 = scmp.eq.s32.totalorder %s31, 1
      %p230 = por %p228, %p229
      %p232 = scmp.ne.s32.totalorder %s217, %s231
      %p233 = scmp.eq.s32.totalorder %s31, 0
      %p234 = por %p232, %p233
      %s236 = sadd.s32 %s235, 1
      %p239 = scmp.eq.s32.totalorder %s25, 1
      %p240 = scmp.ne.s32.totalorder %s235, %s237
      %p241 = scmp.eq.s32.totalorder %s25, 0
      %p242 = por %p240, %p241
      %p243 = scmp.ne.s32.totalorder %s235, %s237
      %p244 = scmp.eq.s32.totalorder %s30, 1
      %p245 = por %p243, %p244
      %p246 = scmp.ne.s32.totalorder %s237, %s238
      %p247 = scmp.eq.s32.totalorder %s30, 0
      %p248 = por %p246, %p247
      %p249 = scmp.ne.s32.totalorder %s237, %s238
      %p250 = scmp.eq.s32.totalorder %s31, 1
      %p251 = por %p249, %p250
      %p253 = scmp.ne.s32.totalorder %s238, %s252
      %p254 = scmp.eq.s32.totalorder %s31, 0
      %p255 = por %p253, %p254
      %s257 = sadd.s32 %s256, 1
      %p260 = scmp.eq.s32.totalorder %s25, 1
      %p261 = scmp.ne.s32.totalorder %s256, %s258
      %p262 = scmp.eq.s32.totalorder %s25, 0
      %p263 = por %p261, %p262
      %p264 = scmp.ne.s32.totalorder %s256, %s258
      %p265 = scmp.eq.s32.totalorder %s30, 1
      %p266 = por %p264, %p265
      %p267 = scmp.ne.s32.totalorder %s258, %s259
      %p268 = scmp.eq.s32.totalorder %s30, 0
      %p269 = por %p267, %p268
      %p270 = scmp.ne.s32.totalorder %s258, %s259
      %p271 = scmp.eq.s32.totalorder %s31, 1
      %p272 = por %p270, %p271
      %p274 = scmp.ne.s32.totalorder %s259, %s273
      %p275 = scmp.eq.s32.totalorder %s31, 0
      %p276 = por %p274, %p275
      %s278 = sadd.s32 %s277, 1
      %p281 = scmp.eq.s32.totalorder %s25, 1
      %p282 = scmp.ne.s32.totalorder %s277, %s279
      %p283 = scmp.eq.s32.totalorder %s25, 0
      %p284 = por %p282, %p283
      %p285 = scmp.ne.s32.totalorder %s277, %s279
      %p286 = scmp.eq.s32.totalorder %s30, 1
      %p287 = por %p285, %p286
      %p288 = scmp.ne.s32.totalorder %s279, %s280
      %p289 = scmp.eq.s32.totalorder %s30, 0
      %p290 = por %p288, %p289
      %p291 = scmp.ne.s32.totalorder %s279, %s280
      %p292 = scmp.eq.s32.totalorder %s31, 1
      %p293 = por %p291, %p292
      %p295 = scmp.ne.s32.totalorder %s280, %s294
      %p296 = scmp.eq.s32.totalorder %s31, 0
      %p297 = por %p295, %p296
      %s298 = ssub.s32 %s32, %s44
      %s299 = ssub.s32 %s33, %s40
      %s300 = sor.u32 %s298, %s299
      %p301 = scmp.eq.s32.totalorder %s300, 0
      %s303 = sadd.s32 %s302, 1
      %s304 = scalar_select %p301, %s302, %s303
      %p307 = pneg %p301
      %p308 = scmp.eq.s32.totalorder %s25, 1
      %p309 = por %p307, %p308
      %p310 = scmp.ne.s32.totalorder %s302, %s305
      %p311 = scmp.eq.s32.totalorder %s25, 0
      %p312 = por %p310, %p311
      %p313 = scmp.ne.s32.totalorder %s302, %s305
      %p314 = scmp.eq.s32.totalorder %s30, 1
      %p315 = por %p313, %p314
      %p316 = scmp.ne.s32.totalorder %s305, %s306
      %p317 = scmp.eq.s32.totalorder %s30, 0
      %p318 = por %p316, %p317
      %p319 = scmp.ne.s32.totalorder %s305, %s306
      %p320 = scmp.eq.s32.totalorder %s31, 1
      %p321 = por %p319, %p320
      %p323 = scmp.ne.s32.totalorder %s306, %s322
      %p324 = scmp.eq.s32.totalorder %s31, 0
      %p325 = por %p323, %p324
      %p326 = scmp.le.s32.totalorder 1, %s25
      %p327 = scmp.lt.s32.totalorder %s25, 3
      %p328 = pnand %p326, %p327
      %p329 = pneg %p328
      // Predicated region
      $region9: #{tpu_custom_call.1} parent=5 // pred_check
        _
      $region10: #{tpu_custom_call.1} parent=5 // pred_check_branch
        %331 = sbr.rel (%p328) target = $region12
      $region11: #{tpu_custom_call.1} parent=5 // pred_region
        %s332 = ssub.s32 %s25, 1
        // Predicated region
        $region13: #{tpu_custom_call.1} parent=11 // pred_check
          %p333 = pneg %p143
        $region14: #{tpu_custom_call.1} parent=11 // pred_check_branch
          %335 = sbr.rel (%p333) target = $region16
        $region15: #{tpu_custom_call.1} parent=11 // pred_region
          %s337 = ssub.s32 128, 128
          %338 = vsyncadd [#allocation6], %s337
          %s339 = smul.addr %s35, 128
          %s340 = scalar_lea.hbm %s3, %s339
          %s342 = sshll.u32 [#allocation5], 4
          %s343 = int_to_ptr.vmem [resolvable:$true] %s342
          %345 = dma.hbm_to_vmem [thread:$0]  %s340, 128, %s343, [#allocation6]
        $region16: #{tpu_custom_call.1} parent=11 // pred_fallthru
          _
        // Predicated region
        $region17: #{tpu_custom_call.1} parent=11 // pred_check
          %p346 = pneg %p164
        $region18: #{tpu_custom_call.1} parent=11 // pred_check_branch
          %348 = sbr.rel (%p346) target = $region20
        $region19: #{tpu_custom_call.1} parent=11 // pred_region
          _
        $region20: #{tpu_custom_call.1} parent=11 // pred_fallthru
          _
        // Predicated region
        $region21: #{tpu_custom_call.1} parent=11 // pred_check
          %p349 = pneg %p185
        $region22: #{tpu_custom_call.1} parent=11 // pred_check_branch
          %351 = sbr.rel (%p349) target = $region24
        $region23: #{tpu_custom_call.1} parent=11 // pred_region
          _
        $region24: #{tpu_custom_call.1} parent=11 // pred_fallthru
          _
        // Predicated region
        $region25: #{tpu_custom_call.1} parent=11 // pred_check
          %p352 = pneg %p206
        $region26: #{tpu_custom_call.1} parent=11 // pred_check_branch
          %354 = sbr.rel (%p352) target = $region28
        $region27: #{tpu_custom_call.1} parent=11 // pred_region
          %s356 = ssub.s32 512, 512
          %357 = vsyncadd [#allocation6], %s356
          %s358 = sshll.u32 [#allocation7], 4
          %s359 = int_to_ptr.vmem [resolvable:$true] %s358
          %364 = dma.hbm_to_vmem [thread:$0]  %s6, 512, %s359, [#allocation6], 128, 128, 8
        $region28: #{tpu_custom_call.1} parent=11 // pred_fallthru
          _
        // Predicated region
        $region29: #{tpu_custom_call.1} parent=11 // pred_check
          %p365 = pneg %p227
        $region30: #{tpu_custom_call.1} parent=11 // pred_check_branch
          %367 = sbr.rel (%p365) target = $region32
        $region31: #{tpu_custom_call.1} parent=11 // pred_region
          %s369 = ssub.s32 512, 512
          %370 = vsyncadd [#allocation9], %s369
          %s371 = sshll.u32 [#allocation8], 4
          %s372 = int_to_ptr.vmem [resolvable:$true] %s371
          %377 = dma.hbm_to_vmem [thread:$0]  %s7, 512, %s372, [#allocation9], 128, 128, 8
        $region32: #{tpu_custom_call.1} parent=11 // pred_fallthru
          _
        // Predicated region
        $region33: #{tpu_custom_call.1} parent=11 // pred_check
          %p378 = pneg %p248
        $region34: #{tpu_custom_call.1} parent=11 // pred_check_branch
          %380 = sbr.rel (%p378) target = $region36
        $region35: #{tpu_custom_call.1} parent=11 // pred_region
          _
        $region36: #{tpu_custom_call.1} parent=11 // pred_fallthru
          _
        // Predicated region
        $region37: #{tpu_custom_call.1} parent=11 // pred_check
          %p381 = pneg %p269
        $region38: #{tpu_custom_call.1} parent=11 // pred_check_branch
          %383 = sbr.rel (%p381) target = $region40
        $region39: #{tpu_custom_call.1} parent=11 // pred_region
          _
        $region40: #{tpu_custom_call.1} parent=11 // pred_fallthru
          _
        // Predicated region
        $region41: #{tpu_custom_call.1} parent=11 // pred_check
          %p384 = pneg %p290
        $region42: #{tpu_custom_call.1} parent=11 // pred_check_branch
          %386 = sbr.rel (%p384) target = $region44
        $region43: #{tpu_custom_call.1} parent=11 // pred_region
          _
        $region44: #{tpu_custom_call.1} parent=11 // pred_fallthru
          _
      $region12: #{tpu_custom_call.1} parent=5 // pred_fallthru
        _
      %p387 = scmp.lt.s32.totalorder %s25, 2
      // Predicated region
      $region45: #{tpu_custom_call.1} parent=5 // pred_check
        %p388 = pneg %p387
      $region46: #{tpu_custom_call.1} parent=5 // pred_check_branch
        %390 = sbr.rel (%p388) target = $region48
      $region47: #{tpu_custom_call.1} parent=5 // pred_region
        // Predicated region
        $region49: #{tpu_custom_call.1} parent=47 // pred_check
          %p391 = pneg %p57
        $region50: #{tpu_custom_call.1} parent=47 // pred_check_branch
          %393 = sbr.rel (%p391) target = $region52
        $region51: #{tpu_custom_call.1} parent=47 // pred_region
          %p394 = scmp.lt.s32.totalorder %s32, 1
          %s395 = scalar_select %p394, %s32, 1
          %s396 = smul.addr %s395, 8
          %s397 = scalar_lea.vmem %s0, %s396
        $region52: #{tpu_custom_call.1} parent=47 // pred_fallthru
          _
        // Predicated region
        $region53: #{tpu_custom_call.1} parent=47 // pred_check
          %p398 = pneg %p83
        $region54: #{tpu_custom_call.1} parent=47 // pred_check_branch
          %400 = sbr.rel (%p398) target = $region56
        $region55: #{tpu_custom_call.1} parent=47 // pred_region
          %p401 = scmp.lt.s32.totalorder %s32, 1
          %s402 = scalar_select %p401, %s32, 1
          %s403 = smul.addr %s402, 4
          %s404 = smul.addr %s403, 8
          %s405 = scalar_lea.vmem %s1, %s404
        $region56: #{tpu_custom_call.1} parent=47 // pred_fallthru
          _
        // Predicated region
        $region57: #{tpu_custom_call.1} parent=47 // pred_check
          %p406 = pneg %p111
        $region58: #{tpu_custom_call.1} parent=47 // pred_check_branch
          %408 = sbr.rel (%p406) target = $region60
        $region59: #{tpu_custom_call.1} parent=47 // pred_region
          %s409 = sand.u32 %s101, 1
          %s410 = scalar_lea.sflag [#allocation3], %s409
          %s411 = sand.u32 %s101, 1
          %s412 = smul.addr %s411, 64
          %s413 = scalar_lea.vmem [#allocation2], %s412
          %s415 = ssub.s32 1024, 1024
          %416 = vsyncadd %s410, %s415
          %s417 = smul.addr %s32, 8
          %s418 = sadd.s32 %s33, %s417
          %s419 = smul.addr %s418, 128
          %s420 = scalar_lea.hbm %s2, %s419
          %s421 = sshll.u32 %s413, 4
          %s422 = int_to_ptr.vmem [resolvable:$true] %s421
          %427 = dma.hbm_to_vmem [thread:$0]  %s420, 1024, %s422, %s410, 128, 128, 8
        $region60: #{tpu_custom_call.1} parent=47 // pred_fallthru
          _
      $region48: #{tpu_custom_call.1} parent=5 // pred_fallthru
        _
      %p428 = scmp.le.s32.totalorder 1, %s25
      %p429 = scmp.lt.s32.totalorder %s25, 3
      %p430 = pnand %p428, %p429
      %p431 = pneg %p430
      // Predicated region
      $region61: #{tpu_custom_call.1} parent=5 // pred_check
        _
      $region62: #{tpu_custom_call.1} parent=5 // pred_check_branch
        %433 = sbr.rel (%p430) target = $region64
      $region63: #{tpu_custom_call.1} parent=5 // pred_region
        %s434 = ssub.s32 %s25, 1
        %s435 = sand.u32 %s104, 1
        %s436 = scalar_lea.sflag [#allocation3], %s435
        %s437 = sand.u32 %s104, 1
        %s438 = smul.addr %s437, 64
        %s439 = scalar_lea.vmem [#allocation2], %s438
        // Predicated region
        $region65: #{tpu_custom_call.1} parent=63 // pred_check
          %p440 = pneg %p117
        $region66: #{tpu_custom_call.1} parent=63 // pred_check_branch
          %442 = sbr.rel (%p440) target = $region68
        $region67: #{tpu_custom_call.1} parent=63 // pred_region
          %443 = dma.done %s436, 1024
        $region68: #{tpu_custom_call.1} parent=63 // pred_fallthru
          _
        // Predicated region
        $region69: #{tpu_custom_call.1} parent=63 // pred_check
          %p444 = pneg %p143
        $region70: #{tpu_custom_call.1} parent=63 // pred_check_branch
          %446 = sbr.rel (%p444) target = $region72
        $region71: #{tpu_custom_call.1} parent=63 // pred_region
          %447 = dma.done [#allocation6], 128
        $region72: #{tpu_custom_call.1} parent=63 // pred_fallthru
          _
        // Predicated region
        $region73: #{tpu_custom_call.1} parent=63 // pred_check
          %p448 = pneg %p206
        $region74: #{tpu_custom_call.1} parent=63 // pred_check_branch
          %450 = sbr.rel (%p448) target = $region76
        $region75: #{tpu_custom_call.1} parent=63 // pred_region
          %451 = dma.done [#allocation6], 512
        $region76: #{tpu_custom_call.1} parent=63 // pred_fallthru
          _
        // Predicated region
        $region77: #{tpu_custom_call.1} parent=63 // pred_check
          %p452 = pneg %p227
        $region78: #{tpu_custom_call.1} parent=63 // pred_check_branch
          %454 = sbr.rel (%p452) target = $region80
        $region79: #{tpu_custom_call.1} parent=63 // pred_region
          %455 = dma.done [#allocation9], 512
        $region80: #{tpu_custom_call.1} parent=63 // pred_fallthru
          _
        %p456 = scmp.lt.s32.totalorder %s34, 1
        %s457 = scalar_select %p456, %s34, 1
        %s458 = smul.addr %s457, 8
        %s459 = scalar_lea.vmem %s0, %s458
        %p460 = pneg %p63
        %p461 = pneg %p60
        %p462 = scmp.lt.s32.totalorder %s34, 1
        %s463 = scalar_select %p462, %s34, 1
        %s464 = smul.addr %s463, 4
        %s465 = smul.addr %s464, 8
        %s466 = scalar_lea.vmem %s1, %s465
        %p467 = pneg %p89
        %p468 = pneg %p86
        %s469 = sand.u32 %s104, 1
        %s470 = scalar_lea.sflag [#allocation3], %s469
        %s471 = sand.u32 %s104, 1
        %s472 = smul.addr %s471, 64
        %s473 = scalar_lea.vmem [#allocation2], %s472
        %p474 = pneg %p117
        %p475 = pneg %p114
        %p476 = pneg %p143
        %p477 = pneg %p140
        %p478 = pneg %p164
        %p479 = pneg %p161
        %p480 = pneg %p185
        %p481 = pneg %p182
        %p482 = pneg %p206
        %p483 = pneg %p203
        %p484 = pneg %p227
        %p485 = pneg %p224
        %p486 = pneg %p248
        %p487 = pneg %p245
        %p488 = pneg %p269
        %p489 = pneg %p266
        %p490 = pneg %p290
        %p491 = pneg %p287
        %p492 = pneg %p318
        %p493 = pneg %p315
        %s494 = sand.u32 %s305, 1
        %s495 = scalar_lea.sflag [#allocation4], %s494
        %s496 = sand.u32 %s305, 1
        %s497 = smul.addr %s496, 8
        %s498 = scalar_lea.vmem [#allocation10], %s497
        %p499 = scmp.lt.s32.totalorder %s34, 1
        %s500 = scalar_select %p499, %s34, 1
        %s501 = smul.addr %s500, 8
        %s502 = scalar_lea.vmem %s0, %s501
        %p503 = scmp.lt.s32.totalorder %s34, 1
        %s504 = scalar_select %p503, %s34, 1
        %s505 = smul.addr %s504, 4
        %s506 = smul.addr %s505, 8
        %s507 = scalar_lea.vmem %s1, %s506
        %s508 = smul.u32 %s35, 8
        %v509 = vld [vmem:[%s502] sm:$0xff]
        %s510 = scalar_lea.vmem %s502, %s508
        %v511 = vld [vmem:[%s510] sm:$0xff]
        %v512 = vld [vmem:[%s4] sm:$0xff]
        %v513 = vld [vmem:[%s4 + $0x8] sm:$0xff]
        %v514 = vld [vmem:[%s4 + $0x10] sm:$0xff]
        %v515 = vld [vmem:[%s4 + $0x18] sm:$0xff]
        %v516 = vld [vmem:[%s507] sm:$0xff]
        %v517 = vld [vmem:[%s507 + $0x8] sm:$0xff]
        %v518 = vld [vmem:[%s507 + $0x10] sm:$0xff]
        %v519 = vld [vmem:[%s507 + $0x18] sm:$0xff]
        %vm520 = vcmask 261120
        %v522 = vsel %vm520, %v512, 0
        %v525 = vsel %vm520, %v513, 0
        %v528 = vsel %vm520, %v514, 0
        %v531 = vsel %vm520, %v515, 0
        %533 = vmatprep.subr.mxu0 0.0
        %534 = vmatpush1.msra.mxu0 0.0
        %535 = vmatprep.subr.mxu0 0.0
        %536 = vmatpush1.msra.mxu0 0.0
        %537 = vmatprep.subr.mxu0 0.0
        %538 = vmatpush1.msra.mxu0 0.0
        %539 = vmatprep.subr.mxu0 0.0
        %540 = vmatpush1.msra.mxu0 0.0
        %541 = vmatprep.subr.mxu0 0.0
        %542 = vmatpush1.msra.mxu0 0.0
        %543 = vmatprep.subr.mxu0 0.0
        %544 = vmatpush1.msra.mxu0 0.0
        %545 = vmatprep.subr.mxu0 0.0
        %546 = vmatpush1.msra.mxu0 0.0
        %547 = vmatprep.subr.mxu0 0.0
        %548 = vmatpush1.msra.mxu0 0.0
        %549 = vmatprep.subr.mxu0 0.0
        %550 = vmatpush1.msra.mxu0 0.0
        %551 = vmatprep.subr.mxu0 0.0
        %552 = vmatpush1.msra.mxu0 0.0
        %553 = vmatprep.subr.mxu0 0.0
        %554 = vmatpush1.msra.mxu0 0.0
        %555 = vmatprep.subr.mxu0 0.0
        %556 = vmatpush1.msra.mxu0 0.0
        %557 = vmatprep.subr.mxu0 0.0
        %558 = vmatpush1.msra.mxu0 %v519
        %559 = vmatprep.subr.mxu0 0.0
        %560 = vmatpush1.msra.mxu0 %v518
        %561 = vmatprep.subr.mxu0 0.0
        %562 = vmatpush1.msra.mxu0 %v517
        %563 = vmatprep.subr.mxu0 0.0
        %564 = vmatpush1.msra.mxu0 %v516
        %565 = vmatprep.subr.mxu0 0.0
        %566 = vmatpush2.msra.mxu0 0.0
        %567 = vmatprep.subr.mxu0 0.0
        %568 = vmatpush2.msra.mxu0 0.0
        %569 = vmatprep.subr.mxu0 0.0
        %570 = vmatpush2.msra.mxu0 0.0
        %571 = vmatprep.subr.mxu0 0.0
        %572 = vmatpush2.msra.mxu0 0.0
        %573 = vmatprep.subr.mxu0 0.0
        %574 = vmatpush2.msra.mxu0 0.0
        %575 = vmatprep.subr.mxu0 0.0
        %576 = vmatpush2.msra.mxu0 0.0
        %577 = vmatprep.subr.mxu0 0.0
        %578 = vmatpush2.msra.mxu0 0.0
        %579 = vmatprep.subr.mxu0 0.0
        %580 = vmatpush2.msra.mxu0 0.0
        %581 = vmatprep.subr.mxu0 0.0
        %582 = vmatpush2.msra.mxu0 0.0
        %583 = vmatprep.subr.mxu0 0.0
        %584 = vmatpush2.msra.mxu0 0.0
        %585 = vmatprep.subr.mxu0 0.0
        %586 = vmatpush2.msra.mxu0 0.0
        %587 = vmatprep.subr.mxu0 0.0
        %588 = vmatpush2.msra.mxu0 0.0
        %589 = vmatprep.subr.mxu0 0.0
        %590 = vmatpush2.msra.mxu0 0.0
        %591 = vmatprep.subr.mxu0 0.0
        %592 = vmatpush2.msra.mxu0 0.0
        %593 = vmatprep.subr.mxu0 0.0
        %594 = vmatpush2.msra.mxu0 0.0
        %595 = vmatprep.subr.mxu0 0.0
        %596 = vmatpush2.msra.mxu0 0.0
        %597 = vmatprep.mubr.f32.mxu0 0.0
        %598 = vmatmul.mubr.f32.gmra.mxu0 %v522
        %v599 = vpop.f32.mrf.mxu0
        %v600 = vadd.f32 0.0, %v599
        %v601 = vpop.f32.mrf.mxu0
        %602 = vmatprep.mubr.f32.mxu0 0.0
        %603 = vmatmul.mubr.f32.gmra.mxu0 %v525
        %v604 = vpop.f32.mrf.mxu0
        %v605 = vadd.f32 0.0, %v604
        %v606 = vpop.f32.mrf.mxu0
        %607 = vmatprep.mubr.f32.mxu0 0.0
        %608 = vmatmul.mubr.f32.gmra.mxu0 %v528
        %v609 = vpop.f32.mrf.mxu0
        %v610 = vadd.f32 0.0, %v609
        %v611 = vpop.f32.mrf.mxu0
        %612 = vmatprep.mubr.f32.mxu0 0.0
        %613 = vmatmul.mubr.f32.gmra.mxu0 %v531
        %v614 = vpop.f32.mrf.mxu0
        %v615 = vadd.f32 0.0, %v614
        %v616 = vpop.f32.mrf.mxu0
        %617 = vdwg.mxu0
        %v618 = vld [vmem:[%s5] sm:$0xff]
        %v619 = vld [vmem:[%s5 + $0x8] sm:$0xff]
        %v620 = vld [vmem:[%s5 + $0x10] sm:$0xff]
        %v621 = vld [vmem:[%s5 + $0x18] sm:$0xff]
        %v623 = vsel %vm520, %v511, 0
        %625 = vmatprep.subr.mxu0 0.0
        %626 = vmatpush1.msra.mxu0 0.0
        %627 = vmatprep.subr.mxu0 0.0
        %628 = vmatpush1.msra.mxu0 0.0
        %629 = vmatprep.subr.mxu0 0.0
        %630 = vmatpush1.msra.mxu0 0.0
        %631 = vmatprep.subr.mxu0 0.0
        %632 = vmatpush1.msra.mxu0 0.0
        %633 = vmatprep.subr.mxu0 0.0
        %634 = vmatpush1.msra.mxu0 0.0
        %635 = vmatprep.subr.mxu0 0.0
        %636 = vmatpush1.msra.mxu0 0.0
        %637 = vmatprep.subr.mxu0 0.0
        %638 = vmatpush1.msra.mxu0 0.0
        %639 = vmatprep.subr.mxu0 0.0
        %640 = vmatpush1.msra.mxu0 0.0
        %641 = vmatprep.subr.mxu0 0.0
        %642 = vmatpush1.msra.mxu0 0.0
        %643 = vmatprep.subr.mxu0 0.0
        %644 = vmatpush1.msra.mxu0 0.0
        %645 = vmatprep.subr.mxu0 0.0
        %646 = vmatpush1.msra.mxu0 0.0
        %647 = vmatprep.subr.mxu0 0.0
        %648 = vmatpush1.msra.mxu0 0.0
        %649 = vmatprep.subr.mxu0 0.0
        %650 = vmatpush1.msra.mxu0 %v621
        %651 = vmatprep.subr.mxu0 0.0
        %652 = vmatpush1.msra.mxu0 %v620
        %653 = vmatprep.subr.mxu0 0.0
        %654 = vmatpush1.msra.mxu0 %v619
        %655 = vmatprep.subr.mxu0 0.0
        %656 = vmatpush1.msra.mxu0 %v618
        %657 = vmatprep.subr.mxu0 0.0
        %658 = vmatpush2.msra.mxu0 0.0
        %659 = vmatprep.subr.mxu0 0.0
        %660 = vmatpush2.msra.mxu0 0.0
        %661 = vmatprep.subr.mxu0 0.0
        %662 = vmatpush2.msra.mxu0 0.0
        %663 = vmatprep.subr.mxu0 0.0
        %664 = vmatpush2.msra.mxu0 0.0
        %665 = vmatprep.subr.mxu0 0.0
        %666 = vmatpush2.msra.mxu0 0.0
        %667 = vmatprep.subr.mxu0 0.0
        %668 = vmatpush2.msra.mxu0 0.0
        %669 = vmatprep.subr.mxu0 0.0
        %670 = vmatpush2.msra.mxu0 0.0
        %671 = vmatprep.subr.mxu0 0.0
        %672 = vmatpush2.msra.mxu0 0.0
        %673 = vmatprep.subr.mxu0 0.0
        %674 = vmatpush2.msra.mxu0 0.0
        %675 = vmatprep.subr.mxu0 0.0
        %676 = vmatpush2.msra.mxu0 0.0
        %677 = vmatprep.subr.mxu0 0.0
        %678 = vmatpush2.msra.mxu0 0.0
        %679 = vmatprep.subr.mxu0 0.0
        %680 = vmatpush2.msra.mxu0 0.0
        %681 = vmatprep.subr.mxu0 0.0
        %682 = vmatpush2.msra.mxu0 0.0
        %683 = vmatprep.subr.mxu0 0.0
        %684 = vmatpush2.msra.mxu0 0.0
        %685 = vmatprep.subr.mxu0 0.0
        %686 = vmatpush2.msra.mxu0 0.0
        %687 = vmatprep.subr.mxu0 0.0
        %688 = vmatpush2.msra.mxu0 0.0
        %689 = vmatprep.mubr.f32.mxu0 0.0
        %690 = vmatmul.mubr.f32.gmra.mxu0 %v623
        %v691 = vpop.f32.mrf.mxu0
        %v692 = vadd.f32 0.0, %v691
        %v693 = vpop.f32.mrf.mxu0
        %694 = vdwg.mxu0
        %v695 = vld [vmem:[#allocation7] sm:$0xff]
        %v696 = vld [vmem:[#allocation7 + $0x8] sm:$0xff]
        %v697 = vld [vmem:[#allocation7 + $0x10] sm:$0xff]
        %v698 = vld [vmem:[#allocation7 + $0x18] sm:$0xff]
        %v700 = vsel %vm520, %v509, 0
        %702 = vmatprep.subr.mxu0 0.0
        %703 = vmatpush1.msra.mxu0 0.0
        %704 = vmatprep.subr.mxu0 0.0
        %705 = vmatpush1.msra.mxu0 0.0
        %706 = vmatprep.subr.mxu0 0.0
        %707 = vmatpush1.msra.mxu0 0.0
        %708 = vmatprep.subr.mxu0 0.0
        %709 = vmatpush1.msra.mxu0 0.0
        %710 = vmatprep.subr.mxu0 0.0
        %711 = vmatpush1.msra.mxu0 0.0
        %712 = vmatprep.subr.mxu0 0.0
        %713 = vmatpush1.msra.mxu0 0.0
        %714 = vmatprep.subr.mxu0 0.0
        %715 = vmatpush1.msra.mxu0 0.0
        %716 = vmatprep.subr.mxu0 0.0
        %717 = vmatpush1.msra.mxu0 0.0
        %718 = vmatprep.subr.mxu0 0.0
        %719 = vmatpush1.msra.mxu0 0.0
        %720 = vmatprep.subr.mxu0 0.0
        %721 = vmatpush1.msra.mxu0 0.0
        %722 = vmatprep.subr.mxu0 0.0
        %723 = vmatpush1.msra.mxu0 0.0
        %724 = vmatprep.subr.mxu0 0.0
        %725 = vmatpush1.msra.mxu0 0.0
        %726 = vmatprep.subr.mxu0 0.0
        %727 = vmatpush1.msra.mxu0 %v698
        %728 = vmatprep.subr.mxu0 0.0
        %729 = vmatpush1.msra.mxu0 %v697
        %730 = vmatprep.subr.mxu0 0.0
        %731 = vmatpush1.msra.mxu0 %v696
        %732 = vmatprep.subr.mxu0 0.0
        %733 = vmatpush1.msra.mxu0 %v695
        %734 = vmatprep.subr.mxu0 0.0
        %735 = vmatpush2.msra.mxu0 0.0
        %736 = vmatprep.subr.mxu0 0.0
        %737 = vmatpush2.msra.mxu0 0.0
        %738 = vmatprep.subr.mxu0 0.0
        %739 = vmatpush2.msra.mxu0 0.0
        %740 = vmatprep.subr.mxu0 0.0
        %741 = vmatpush2.msra.mxu0 0.0
        %742 = vmatprep.subr.mxu0 0.0
        %743 = vmatpush2.msra.mxu0 0.0
        %744 = vmatprep.subr.mxu0 0.0
        %745 = vmatpush2.msra.mxu0 0.0
        %746 = vmatprep.subr.mxu0 0.0
        %747 = vmatpush2.msra.mxu0 0.0
        %748 = vmatprep.subr.mxu0 0.0
        %749 = vmatpush2.msra.mxu0 0.0
        %750 = vmatprep.subr.mxu0 0.0
        %751 = vmatpush2.msra.mxu0 0.0
        %752 = vmatprep.subr.mxu0 0.0
        %753 = vmatpush2.msra.mxu0 0.0
        %754 = vmatprep.subr.mxu0 0.0
        %755 = vmatpush2.msra.mxu0 0.0
        %756 = vmatprep.subr.mxu0 0.0
        %757 = vmatpush2.msra.mxu0 0.0
        %758 = vmatprep.subr.mxu0 0.0
        %759 = vmatpush2.msra.mxu0 0.0
        %760 = vmatprep.subr.mxu0 0.0
        %761 = vmatpush2.msra.mxu0 0.0
        %762 = vmatprep.subr.mxu0 0.0
        %763 = vmatpush2.msra.mxu0 0.0
        %764 = vmatprep.subr.mxu0 0.0
        %765 = vmatpush2.msra.mxu0 0.0
        %766 = vmatprep.mubr.f32.mxu0 0.0
        %767 = vmatmul.mubr.f32.gmra.mxu0 %v700
        %v768 = vpop.f32.mrf.mxu0
        %v769 = vadd.f32 0.0, %v768
        %v770 = vpop.f32.mrf.mxu0
        %771 = vdwg.mxu0
        %v772 = vld [vmem:[#allocation5] sm:$0xff]
        %v773 = vld [vmem:[%s439] sm:$0xff]
        %775 = vset.pattern.permute.xlu0 0
        %776 = vperm.xlu0 %775, %v692
        %v777 = vpop.permute.xlu0 %776
        %v779 = vlaneseq
        %v780 = vshrl.u32 %v779, 7
        %v781 = vsub.s32 0, %v780
        %v782 = vrot.slane %v600, %v781
        %v783 = vmul.f32 %v777, %v782
        %v784 = vmul.f32 %v783, %v773
        %v785 = vadd.f32 %v772, %v784
        %786 = vset.pattern.permute.xlu0 8
        %787 = vperm.xlu0 %786, %v692
        %v788 = vpop.permute.xlu0 %787
        %v790 = vlaneseq
        %v791 = vshrl.u32 %v790, 7
        %v792 = vsub.s32 0, %v791
        %v793 = vrot.slane %v605, %v792
        %v794 = vmul.f32 %v788, %v793
        %v795 = vmul.f32 %v794, %v773
        %v796 = vadd.f32 %v772, %v795
        %797 = vset.pattern.permute.xlu0 16
        %798 = vperm.xlu0 %797, %v692
        %v799 = vpop.permute.xlu0 %798
        %v801 = vlaneseq
        %v802 = vshrl.u32 %v801, 7
        %v803 = vsub.s32 0, %v802
        %v804 = vrot.slane %v610, %v803
        %v805 = vmul.f32 %v799, %v804
        %v806 = vmul.f32 %v805, %v773
        %v807 = vadd.f32 %v772, %v806
        %808 = vset.pattern.permute.xlu0 24
        %809 = vperm.xlu0 %808, %v692
        %v810 = vpop.permute.xlu0 %809
        %v812 = vlaneseq
        %v813 = vshrl.u32 %v812, 7
        %v814 = vsub.s32 0, %v813
        %v815 = vrot.slane %v615, %v814
        %v816 = vmul.f32 %v810, %v815
        %v817 = vmul.f32 %v816, %v773
        %v818 = vadd.f32 %v772, %v817
        %s819 = scalar_lea.vmem %s439, 8 [#allocation2]
        %v820 = vld [vmem:[%s819] sm:$0xff]
        %821 = vset.pattern.permute.xlu0 1
        %822 = vperm.xlu0 %821, %v692
        %v823 = vpop.permute.xlu0 %822
        %v825 = vlaneseq
        %v826 = vshrl.u32 %v825, 7
        %v827 = vsub.s32 1, %v826
        %v828 = vrot.slane %v600, %v827
        %v829 = vmul.f32 %v823, %v828
        %v830 = vmul.f32 %v829, %v820
        %v831 = vadd.f32 %v785, %v830
        %832 = vset.pattern.permute.xlu0 9
        %833 = vperm.xlu0 %832, %v692
        %v834 = vpop.permute.xlu0 %833
        %v836 = vlaneseq
        %v837 = vshrl.u32 %v836, 7
        %v838 = vsub.s32 1, %v837
        %v839 = vrot.slane %v605, %v838
        %v840 = vmul.f32 %v834, %v839
        %v841 = vmul.f32 %v840, %v820
        %v842 = vadd.f32 %v796, %v841
        %843 = vset.pattern.permute.xlu0 17
        %844 = vperm.xlu0 %843, %v692
        %v845 = vpop.permute.xlu0 %844
        %v847 = vlaneseq
        %v848 = vshrl.u32 %v847, 7
        %v849 = vsub.s32 1, %v848
        %v850 = vrot.slane %v610, %v849
        %v851 = vmul.f32 %v845, %v850
        %v852 = vmul.f32 %v851, %v820
        %v853 = vadd.f32 %v807, %v852
        %854 = vset.pattern.permute.xlu0 25
        %855 = vperm.xlu0 %854, %v692
        %v856 = vpop.permute.xlu0 %855
        %v858 = vlaneseq
        %v859 = vshrl.u32 %v858, 7
        %v860 = vsub.s32 1, %v859
        %v861 = vrot.slane %v615, %v860
        %v862 = vmul.f32 %v856, %v861
        %v863 = vmul.f32 %v862, %v820
        %v864 = vadd.f32 %v818, %v863
        %s865 = scalar_lea.vmem %s439, 16 [#allocation2]
        %v866 = vld [vmem:[%s865] sm:$0xff]
        %867 = vset.pattern.permute.xlu0 2
        %868 = vperm.xlu0 %867, %v692
        %v869 = vpop.permute.xlu0 %868
        %v871 = vlaneseq
        %v872 = vshrl.u32 %v871, 7
        %v873 = vsub.s32 2, %v872
        %v874 = vrot.slane %v600, %v873
        %v875 = vmul.f32 %v869, %v874
        %v876 = vmul.f32 %v875, %v866
        %v877 = vadd.f32 %v831, %v876
        %878 = vset.pattern.permute.xlu0 10
        %879 = vperm.xlu0 %878, %v692
        %v880 = vpop.permute.xlu0 %879
        %v882 = vlaneseq
        %v883 = vshrl.u32 %v882, 7
        %v884 = vsub.s32 2, %v883
        %v885 = vrot.slane %v605, %v884
        %v886 = vmul.f32 %v880, %v885
        %v887 = vmul.f32 %v886, %v866
        %v888 = vadd.f32 %v842, %v887
        %889 = vset.pattern.permute.xlu0 18
        %890 = vperm.xlu0 %889, %v692
        %v891 = vpop.permute.xlu0 %890
        %v893 = vlaneseq
        %v894 = vshrl.u32 %v893, 7
        %v895 = vsub.s32 2, %v894
        %v896 = vrot.slane %v610, %v895
        %v897 = vmul.f32 %v891, %v896
        %v898 = vmul.f32 %v897, %v866
        %v899 = vadd.f32 %v853, %v898
        %900 = vset.pattern.permute.xlu0 26
        %901 = vperm.xlu0 %900, %v692
        %v902 = vpop.permute.xlu0 %901
        %v904 = vlaneseq
        %v905 = vshrl.u32 %v904, 7
        %v906 = vsub.s32 2, %v905
        %v907 = vrot.slane %v615, %v906
        %v908 = vmul.f32 %v902, %v907
        %v909 = vmul.f32 %v908, %v866
        %v910 = vadd.f32 %v864, %v909
        %s911 = scalar_lea.vmem %s439, 24 [#allocation2]
        %v912 = vld [vmem:[%s911] sm:$0xff]
        %913 = vset.pattern.permute.xlu0 3
        %914 = vperm.xlu0 %913, %v692
        %v915 = vpop.permute.xlu0 %914
        %v917 = vlaneseq
        %v918 = vshrl.u32 %v917, 7
        %v919 = vsub.s32 3, %v918
        %v920 = vrot.slane %v600, %v919
        %v921 = vmul.f32 %v915, %v920
        %v922 = vmul.f32 %v921, %v912
        %v923 = vadd.f32 %v877, %v922
        %924 = vset.pattern.permute.xlu0 11
        %925 = vperm.xlu0 %924, %v692
        %v926 = vpop.permute.xlu0 %925
        %v928 = vlaneseq
        %v929 = vshrl.u32 %v928, 7
        %v930 = vsub.s32 3, %v929
        %v931 = vrot.slane %v605, %v930
        %v932 = vmul.f32 %v926, %v931
        %v933 = vmul.f32 %v932, %v912
        %v934 = vadd.f32 %v888, %v933
        %935 = vset.pattern.permute.xlu0 19
        %936 = vperm.xlu0 %935, %v692
        %v937 = vpop.permute.xlu0 %936
        %v939 = vlaneseq
        %v940 = vshrl.u32 %v939, 7
        %v941 = vsub.s32 3, %v940
        %v942 = vrot.slane %v610, %v941
        %v943 = vmul.f32 %v937, %v942
        %v944 = vmul.f32 %v943, %v912
        %v945 = vadd.f32 %v899, %v944
        %946 = vset.pattern.permute.xlu0 27
        %947 = vperm.xlu0 %946, %v692
        %v948 = vpop.permute.xlu0 %947
        %v950 = vlaneseq
        %v951 = vshrl.u32 %v950, 7
        %v952 = vsub.s32 3, %v951
        %v953 = vrot.slane %v615, %v952
        %v954 = vmul.f32 %v948, %v953
        %v955 = vmul.f32 %v954, %v912
        %v956 = vadd.f32 %v910, %v955
        %s957 = scalar_lea.vmem %s439, 32 [#allocation2]
        %v958 = vld [vmem:[%s957] sm:$0xff]
        %959 = vset.pattern.permute.xlu0 4
        %960 = vperm.xlu0 %959, %v692
        %v961 = vpop.permute.xlu0 %960
        %v963 = vlaneseq
        %v964 = vshrl.u32 %v963, 7
        %v965 = vsub.s32 4, %v964
        %v966 = vrot.slane %v600, %v965
        %v967 = vmul.f32 %v961, %v966
        %v968 = vmul.f32 %v967, %v958
        %v969 = vadd.f32 %v923, %v968
        %970 = vset.pattern.permute.xlu0 12
        %971 = vperm.xlu0 %970, %v692
        %v972 = vpop.permute.xlu0 %971
        %v974 = vlaneseq
        %v975 = vshrl.u32 %v974, 7
        %v976 = vsub.s32 4, %v975
        %v977 = vrot.slane %v605, %v976
        %v978 = vmul.f32 %v972, %v977
        %v979 = vmul.f32 %v978, %v958
        %v980 = vadd.f32 %v934, %v979
        %981 = vset.pattern.permute.xlu0 20
        %982 = vperm.xlu0 %981, %v692
        %v983 = vpop.permute.xlu0 %982
        %v985 = vlaneseq
        %v986 = vshrl.u32 %v985, 7
        %v987 = vsub.s32 4, %v986
        %v988 = vrot.slane %v610, %v987
        %v989 = vmul.f32 %v983, %v988
        %v990 = vmul.f32 %v989, %v958
        %v991 = vadd.f32 %v945, %v990
        %992 = vset.pattern.permute.xlu0 28
        %993 = vperm.xlu0 %992, %v692
        %v994 = vpop.permute.xlu0 %993
        %v996 = vlaneseq
        %v997 = vshrl.u32 %v996, 7
        %v998 = vsub.s32 4, %v997
        %v999 = vrot.slane %v615, %v998
        %v1000 = vmul.f32 %v994, %v999
        %v1001 = vmul.f32 %v1000, %v958
        %v1002 = vadd.f32 %v956, %v1001
        %s1003 = scalar_lea.vmem %s439, 40 [#allocation2]
        %v1004 = vld [vmem:[%s1003] sm:$0xff]
        %1005 = vset.pattern.permute.xlu0 5
        %1006 = vperm.xlu0 %1005, %v692
        %v1007 = vpop.permute.xlu0 %1006
        %v1009 = vlaneseq
        %v1010 = vshrl.u32 %v1009, 7
        %v1011 = vsub.s32 5, %v1010
        %v1012 = vrot.slane %v600, %v1011
        %v1013 = vmul.f32 %v1007, %v1012
        %v1014 = vmul.f32 %v1013, %v1004
        %v1015 = vadd.f32 %v969, %v1014
        %1016 = vset.pattern.permute.xlu0 13
        %1017 = vperm.xlu0 %1016, %v692
        %v1018 = vpop.permute.xlu0 %1017
        %v1020 = vlaneseq
        %v1021 = vshrl.u32 %v1020, 7
        %v1022 = vsub.s32 5, %v1021
        %v1023 = vrot.slane %v605, %v1022
        %v1024 = vmul.f32 %v1018, %v1023
        %v1025 = vmul.f32 %v1024, %v1004
        %v1026 = vadd.f32 %v980, %v1025
        %1027 = vset.pattern.permute.xlu0 21
        %1028 = vperm.xlu0 %1027, %v692
        %v1029 = vpop.permute.xlu0 %1028
        %v1031 = vlaneseq
        %v1032 = vshrl.u32 %v1031, 7
        %v1033 = vsub.s32 5, %v1032
        %v1034 = vrot.slane %v610, %v1033
        %v1035 = vmul.f32 %v1029, %v1034
        %v1036 = vmul.f32 %v1035, %v1004
        %v1037 = vadd.f32 %v991, %v1036
        %1038 = vset.pattern.permute.xlu0 29
        %1039 = vperm.xlu0 %1038, %v692
        %v1040 = vpop.permute.xlu0 %1039
        %v1042 = vlaneseq
        %v1043 = vshrl.u32 %v1042, 7
        %v1044 = vsub.s32 5, %v1043
        %v1045 = vrot.slane %v615, %v1044
        %v1046 = vmul.f32 %v1040, %v1045
        %v1047 = vmul.f32 %v1046, %v1004
        %v1048 = vadd.f32 %v1002, %v1047
        %s1049 = scalar_lea.vmem %s439, 48 [#allocation2]
        %v1050 = vld [vmem:[%s1049] sm:$0xff]
        %1051 = vset.pattern.permute.xlu0 6
        %1052 = vperm.xlu0 %1051, %v692
        %v1053 = vpop.permute.xlu0 %1052
        %v1055 = vlaneseq
        %v1056 = vshrl.u32 %v1055, 7
        %v1057 = vsub.s32 6, %v1056
        %v1058 = vrot.slane %v600, %v1057
        %v1059 = vmul.f32 %v1053, %v1058
        %v1060 = vmul.f32 %v1059, %v1050
        %v1061 = vadd.f32 %v1015, %v1060
        %1062 = vset.pattern.permute.xlu0 14
        %1063 = vperm.xlu0 %1062, %v692
        %v1064 = vpop.permute.xlu0 %1063
        %v1066 = vlaneseq
        %v1067 = vshrl.u32 %v1066, 7
        %v1068 = vsub.s32 6, %v1067
        %v1069 = vrot.slane %v605, %v1068
        %v1070 = vmul.f32 %v1064, %v1069
        %v1071 = vmul.f32 %v1070, %v1050
        %v1072 = vadd.f32 %v1026, %v1071
        %1073 = vset.pattern.permute.xlu0 22
        %1074 = vperm.xlu0 %1073, %v692
        %v1075 = vpop.permute.xlu0 %1074
        %v1077 = vlaneseq
        %v1078 = vshrl.u32 %v1077, 7
        %v1079 = vsub.s32 6, %v1078
        %v1080 = vrot.slane %v610, %v1079
        %v1081 = vmul.f32 %v1075, %v1080
        %v1082 = vmul.f32 %v1081, %v1050
        %v1083 = vadd.f32 %v1037, %v1082
        %1084 = vset.pattern.permute.xlu0 30
        %1085 = vperm.xlu0 %1084, %v692
        %v1086 = vpop.permute.xlu0 %1085
        %v1088 = vlaneseq
        %v1089 = vshrl.u32 %v1088, 7
        %v1090 = vsub.s32 6, %v1089
        %v1091 = vrot.slane %v615, %v1090
        %v1092 = vmul.f32 %v1086, %v1091
        %v1093 = vmul.f32 %v1092, %v1050
        %v1094 = vadd.f32 %v1048, %v1093
        %s1095 = scalar_lea.vmem %s439, 56 [#allocation2]
        %v1096 = vld [vmem:[%s1095] sm:$0xff]
        %1097 = vset.pattern.permute.xlu0 7
        %1098 = vperm.xlu0 %1097, %v692
        %v1099 = vpop.permute.xlu0 %1098
        %v1101 = vlaneseq
        %v1102 = vshrl.u32 %v1101, 7
        %v1103 = vsub.s32 7, %v1102
        %v1104 = vrot.slane %v600, %v1103
        %v1105 = vmul.f32 %v1099, %v1104
        %v1106 = vmul.f32 %v1105, %v1096
        %v1107 = vadd.f32 %v1061, %v1106
        %1108 = vset.pattern.permute.xlu0 15
        %1109 = vperm.xlu0 %1108, %v692
        %v1110 = vpop.permute.xlu0 %1109
        %v1112 = vlaneseq
        %v1113 = vshrl.u32 %v1112, 7
        %v1114 = vsub.s32 7, %v1113
        %v1115 = vrot.slane %v605, %v1114
        %v1116 = vmul.f32 %v1110, %v1115
        %v1117 = vmul.f32 %v1116, %v1096
        %v1118 = vadd.f32 %v1072, %v1117
        %1119 = vset.pattern.permute.xlu0 23
        %1120 = vperm.xlu0 %1119, %v692
        %v1121 = vpop.permute.xlu0 %1120
        %v1123 = vlaneseq
        %v1124 = vshrl.u32 %v1123, 7
        %v1125 = vsub.s32 7, %v1124
        %v1126 = vrot.slane %v610, %v1125
        %v1127 = vmul.f32 %v1121, %v1126
        %v1128 = vmul.f32 %v1127, %v1096
        %v1129 = vadd.f32 %v1083, %v1128
        %1130 = vset.pattern.permute.xlu0 31
        %1131 = vperm.xlu0 %1130, %v692
        %v1132 = vpop.permute.xlu0 %1131
        %v1134 = vlaneseq
        %v1135 = vshrl.u32 %v1134, 7
        %v1136 = vsub.s32 7, %v1135
        %v1137 = vrot.slane %v615, %v1136
        %v1138 = vmul.f32 %v1132, %v1137
        %v1139 = vmul.f32 %v1138, %v1096
        %v1140 = vadd.f32 %v1094, %v1139
        %vm1141 = vcmask 64512
        %v1142 = vsel %vm1141, %v1107, -inf
        %1143 = vmax.xlane.f32.xlu0 %v1142
        %v1144 = vpop.xlane.xlu0 %1143
        %v1145 = vsub.f32 %v1107, %v1144
        %v1146 = vmul.f32 %v1145, 1.442695
        %v1147 = vpow.pop %v1146
        %v1148 = vsel %vm1141, %v1147, 0.0
        %1149 = vadd.xlane.f32.xlu0 %v1148
        %v1150 = vpop.xlane.xlu0 %1149
        %v1151 = vrcp.pop %v1150
        %v1152 = vmul.f32 %v1147, %v1151
        %v1154 = vsel %vm1141, %v1152, 0
        %1156 = vmatprep.subr.mxu0 0.0
        %1157 = vmatpush1.msra.mxu0 0.0
        %1158 = vmatprep.subr.mxu0 0.0
        %1159 = vmatpush1.msra.mxu0 0.0
        %1160 = vmatprep.subr.mxu0 0.0
        %1161 = vmatpush1.msra.mxu0 0.0
        %1162 = vmatprep.subr.mxu0 0.0
        %1163 = vmatpush1.msra.mxu0 0.0
        %1164 = vmatprep.subr.mxu0 0.0
        %1165 = vmatpush1.msra.mxu0 0.0
        %1166 = vmatprep.subr.mxu0 0.0
        %1167 = vmatpush1.msra.mxu0 0.0
        %1168 = vmatprep.subr.mxu0 0.0
        %1169 = vmatpush1.msra.mxu0 0.0
        %1170 = vmatprep.subr.mxu0 0.0
        %1171 = vmatpush1.msra.mxu0 0.0
        %1172 = vmatprep.subr.mxu0 0.0
        %1173 = vmatpush1.msra.mxu0 0.0
        %1174 = vmatprep.subr.mxu0 0.0
        %1175 = vmatpush1.msra.mxu0 0.0
        %1176 = vmatprep.subr.mxu0 0.0
        %1177 = vmatpush1.msra.mxu0 0.0
        %1178 = vmatprep.subr.mxu0 0.0
        %1179 = vmatpush1.msra.mxu0 0.0
        %1180 = vmatprep.subr.mxu0 0.0
        %1181 = vmatpush1.msra.mxu0 0.0
        %1182 = vmatprep.subr.mxu0 0.0
        %1183 = vmatpush1.msra.mxu0 0.0
        %1184 = vmatprep.subr.mxu0 0.0
        %1185 = vmatpush1.msra.mxu0 0.0
        %1186 = vmatprep.subr.mxu0 0.0
        %1187 = vmatpush1.msra.mxu0 %v769
        %1188 = vmatprep.subr.mxu0 0.0
        %1189 = vmatpush2.msra.mxu0 0.0
        %1190 = vmatprep.subr.mxu0 0.0
        %1191 = vmatpush2.msra.mxu0 0.0
        %1192 = vmatprep.subr.mxu0 0.0
        %1193 = vmatpush2.msra.mxu0 0.0
        %1194 = vmatprep.subr.mxu0 0.0
        %1195 = vmatpush2.msra.mxu0 0.0
        %1196 = vmatprep.subr.mxu0 0.0
        %1197 = vmatpush2.msra.mxu0 0.0
        %1198 = vmatprep.subr.mxu0 0.0
        %1199 = vmatpush2.msra.mxu0 0.0
        %1200 = vmatprep.subr.mxu0 0.0
        %1201 = vmatpush2.msra.mxu0 0.0
        %1202 = vmatprep.subr.mxu0 0.0
        %1203 = vmatpush2.msra.mxu0 0.0
        %1204 = vmatprep.subr.mxu0 0.0
        %1205 = vmatpush2.msra.mxu0 0.0
        %1206 = vmatprep.subr.mxu0 0.0
        %1207 = vmatpush2.msra.mxu0 0.0
        %1208 = vmatprep.subr.mxu0 0.0
        %1209 = vmatpush2.msra.mxu0 0.0
        %1210 = vmatprep.subr.mxu0 0.0
        %1211 = vmatpush2.msra.mxu0 0.0
        %1212 = vmatprep.subr.mxu0 0.0
        %1213 = vmatpush2.msra.mxu0 0.0
        %1214 = vmatprep.subr.mxu0 0.0
        %1215 = vmatpush2.msra.mxu0 0.0
        %1216 = vmatprep.subr.mxu0 0.0
        %1217 = vmatpush2.msra.mxu0 0.0
        %1218 = vmatprep.subr.mxu0 0.0
        %1219 = vmatpush2.msra.mxu0 0.0
        %1220 = vmatprep.mubr.f32.mxu0 0.0
        %1221 = vmatmul.mubr.f32.gmra.mxu0 %v1154
        %v1222 = vpop.f32.mrf.mxu0
        %v1223 = vadd.f32 0.0, %v1222
        %v1224 = vpop.f32.mrf.mxu0
        %1225 = vdwg.mxu0
        %v1226 = vld [vmem:[#allocation8] sm:$0xff]
        %v1227 = vsel %vm1141, %v1118, -inf
        %1228 = vmax.xlane.f32.xlu0 %v1227
        %v1229 = vpop.xlane.xlu0 %1228
        %v1230 = vsub.f32 %v1118, %v1229
        %v1231 = vmul.f32 %v1230, 1.442695
        %v1232 = vpow.pop %v1231
        %v1233 = vsel %vm1141, %v1232, 0.0
        %1234 = vadd.xlane.f32.xlu0 %v1233
        %v1235 = vpop.xlane.xlu0 %1234
        %v1236 = vrcp.pop %v1235
        %v1237 = vmul.f32 %v1232, %v1236
        %1239 = vrot.lane.b32.xlu0 %v769, 120
        %v1240 = vpop.permute.xlu0 %1239
        %v1243 = vsel %vm1141, %v1237, 0
        %1245 = vmatprep.subr.mxu0 0.0
        %1246 = vmatpush1.msra.mxu0 0.0
        %1247 = vmatprep.subr.mxu0 0.0
        %1248 = vmatpush1.msra.mxu0 0.0
        %1249 = vmatprep.subr.mxu0 0.0
        %1250 = vmatpush1.msra.mxu0 0.0
        %1251 = vmatprep.subr.mxu0 0.0
        %1252 = vmatpush1.msra.mxu0 0.0
        %1253 = vmatprep.subr.mxu0 0.0
        %1254 = vmatpush1.msra.mxu0 0.0
        %1255 = vmatprep.subr.mxu0 0.0
        %1256 = vmatpush1.msra.mxu0 0.0
        %1257 = vmatprep.subr.mxu0 0.0
        %1258 = vmatpush1.msra.mxu0 0.0
        %1259 = vmatprep.subr.mxu0 0.0
        %1260 = vmatpush1.msra.mxu0 0.0
        %1261 = vmatprep.subr.mxu0 0.0
        %1262 = vmatpush1.msra.mxu0 0.0
        %1263 = vmatprep.subr.mxu0 0.0
        %1264 = vmatpush1.msra.mxu0 0.0
        %1265 = vmatprep.subr.mxu0 0.0
        %1266 = vmatpush1.msra.mxu0 0.0
        %1267 = vmatprep.subr.mxu0 0.0
        %1268 = vmatpush1.msra.mxu0 0.0
        %1269 = vmatprep.subr.mxu0 0.0
        %1270 = vmatpush1.msra.mxu0 0.0
        %1271 = vmatprep.subr.mxu0 0.0
        %1272 = vmatpush1.msra.mxu0 0.0
        %1273 = vmatprep.subr.mxu0 0.0
        %1274 = vmatpush1.msra.mxu0 0.0
        %1275 = vmatprep.subr.mxu0 0.0
        %1276 = vmatpush1.msra.mxu0 %v1240
        %1277 = vmatprep.subr.mxu0 0.0
        %1278 = vmatpush2.msra.mxu0 0.0
        %1279 = vmatprep.subr.mxu0 0.0
        %1280 = vmatpush2.msra.mxu0 0.0
        %1281 = vmatprep.subr.mxu0 0.0
        %1282 = vmatpush2.msra.mxu0 0.0
        %1283 = vmatprep.subr.mxu0 0.0
        %1284 = vmatpush2.msra.mxu0 0.0
        %1285 = vmatprep.subr.mxu0 0.0
        %1286 = vmatpush2.msra.mxu0 0.0
        %1287 = vmatprep.subr.mxu0 0.0
        %1288 = vmatpush2.msra.mxu0 0.0
        %1289 = vmatprep.subr.mxu0 0.0
        %1290 = vmatpush2.msra.mxu0 0.0
        %1291 = vmatprep.subr.mxu0 0.0
        %1292 = vmatpush2.msra.mxu0 0.0
        %1293 = vmatprep.subr.mxu0 0.0
        %1294 = vmatpush2.msra.mxu0 0.0
        %1295 = vmatprep.subr.mxu0 0.0
        %1296 = vmatpush2.msra.mxu0 0.0
        %1297 = vmatprep.subr.mxu0 0.0
        %1298 = vmatpush2.msra.mxu0 0.0
        %1299 = vmatprep.subr.mxu0 0.0
        %1300 = vmatpush2.msra.mxu0 0.0
        %1301 = vmatprep.subr.mxu0 0.0
        %1302 = vmatpush2.msra.mxu0 0.0
        %1303 = vmatprep.subr.mxu0 0.0
        %1304 = vmatpush2.msra.mxu0 0.0
        %1305 = vmatprep.subr.mxu0 0.0
        %1306 = vmatpush2.msra.mxu0 0.0
        %1307 = vmatprep.subr.mxu0 0.0
        %1308 = vmatpush2.msra.mxu0 0.0
        %1309 = vmatprep.mubr.f32.mxu0 0.0
        %1310 = vmatmul.mubr.f32.gmra.mxu0 %v1243
        %v1311 = vpop.f32.mrf.mxu0
        %v1312 = vadd.f32 0.0, %v1311
        %v1313 = vpop.f32.mrf.mxu0
        %1314 = vdwg.mxu0
        %v1315 = vld [vmem:[#allocation8 + $0x8] sm:$0xff]
        %v1317 = vsel %vm1141, %v1312, 0
        %1319 = vmatprep.subr.mxu0 0.0
        %1320 = vmatpush1.msra.mxu0 0.0
        %1321 = vmatprep.subr.mxu0 0.0
        %1322 = vmatpush1.msra.mxu0 0.0
        %1323 = vmatprep.subr.mxu0 0.0
        %1324 = vmatpush1.msra.mxu0 0.0
        %1325 = vmatprep.subr.mxu0 0.0
        %1326 = vmatpush1.msra.mxu0 0.0
        %1327 = vmatprep.subr.mxu0 0.0
        %1328 = vmatpush1.msra.mxu0 0.0
        %1329 = vmatprep.subr.mxu0 0.0
        %1330 = vmatpush1.msra.mxu0 0.0
        %1331 = vmatprep.subr.mxu0 0.0
        %1332 = vmatpush1.msra.mxu0 0.0
        %1333 = vmatprep.subr.mxu0 0.0
        %1334 = vmatpush1.msra.mxu0 0.0
        %1335 = vmatprep.subr.mxu0 0.0
        %1336 = vmatpush1.msra.mxu0 0.0
        %1337 = vmatprep.subr.mxu0 0.0
        %1338 = vmatpush1.msra.mxu0 0.0
        %1339 = vmatprep.subr.mxu0 0.0
        %1340 = vmatpush1.msra.mxu0 0.0
        %1341 = vmatprep.subr.mxu0 0.0
        %1342 = vmatpush1.msra.mxu0 0.0
        %1343 = vmatprep.subr.mxu0 0.0
        %1344 = vmatpush1.msra.mxu0 0.0
        %1345 = vmatprep.subr.mxu0 0.0
        %1346 = vmatpush1.msra.mxu0 0.0
        %1347 = vmatprep.subr.mxu0 0.0
        %1348 = vmatpush1.msra.mxu0 0.0
        %1349 = vmatprep.subr.mxu0 0.0
        %1350 = vmatpush1.msra.mxu0 %v1315
        %1351 = vmatprep.subr.mxu0 0.0
        %1352 = vmatpush2.msra.mxu0 0.0
        %1353 = vmatprep.subr.mxu0 0.0
        %1354 = vmatpush2.msra.mxu0 0.0
        %1355 = vmatprep.subr.mxu0 0.0
        %1356 = vmatpush2.msra.mxu0 0.0
        %1357 = vmatprep.subr.mxu0 0.0
        %1358 = vmatpush2.msra.mxu0 0.0
        %1359 = vmatprep.subr.mxu0 0.0
        %1360 = vmatpush2.msra.mxu0 0.0
        %1361 = vmatprep.subr.mxu0 0.0
        %1362 = vmatpush2.msra.mxu0 0.0
        %1363 = vmatprep.subr.mxu0 0.0
        %1364 = vmatpush2.msra.mxu0 0.0
        %1365 = vmatprep.subr.mxu0 0.0
        %1366 = vmatpush2.msra.mxu0 0.0
        %1367 = vmatprep.subr.mxu0 0.0
        %1368 = vmatpush2.msra.mxu0 0.0
        %1369 = vmatprep.subr.mxu0 0.0
        %1370 = vmatpush2.msra.mxu0 0.0
        %1371 = vmatprep.subr.mxu0 0.0
        %1372 = vmatpush2.msra.mxu0 0.0
        %1373 = vmatprep.subr.mxu0 0.0
        %1374 = vmatpush2.msra.mxu0 0.0
        %1375 = vmatprep.subr.mxu0 0.0
        %1376 = vmatpush2.msra.mxu0 0.0
        %1377 = vmatprep.subr.mxu0 0.0
        %1378 = vmatpush2.msra.mxu0 0.0
        %1379 = vmatprep.subr.mxu0 0.0
        %1380 = vmatpush2.msra.mxu0 0.0
        %1381 = vmatprep.subr.mxu0 0.0
        %1382 = vmatpush2.msra.mxu0 0.0
        %1383 = vmatprep.mubr.f32.mxu0 0.0
        %1384 = vmatmul.mubr.f32.gmra.mxu0 %v1317
        %v1385 = vpop.f32.mrf.mxu0
        %v1386 = vadd.f32 0.0, %v1385
        %v1387 = vpop.f32.mrf.mxu0
        %1388 = vdwg.mxu0
        %v1390 = vsel %vm1141, %v1223, 0
        %1392 = vmatprep.subr.mxu0 0.0
        %1393 = vmatpush1.msra.mxu0 0.0
        %1394 = vmatprep.subr.mxu0 0.0
        %1395 = vmatpush1.msra.mxu0 0.0
        %1396 = vmatprep.subr.mxu0 0.0
        %1397 = vmatpush1.msra.mxu0 0.0
        %1398 = vmatprep.subr.mxu0 0.0
        %1399 = vmatpush1.msra.mxu0 0.0
        %1400 = vmatprep.subr.mxu0 0.0
        %1401 = vmatpush1.msra.mxu0 0.0
        %1402 = vmatprep.subr.mxu0 0.0
        %1403 = vmatpush1.msra.mxu0 0.0
        %1404 = vmatprep.subr.mxu0 0.0
        %1405 = vmatpush1.msra.mxu0 0.0
        %1406 = vmatprep.subr.mxu0 0.0
        %1407 = vmatpush1.msra.mxu0 0.0
        %1408 = vmatprep.subr.mxu0 0.0
        %1409 = vmatpush1.msra.mxu0 0.0
        %1410 = vmatprep.subr.mxu0 0.0
        %1411 = vmatpush1.msra.mxu0 0.0
        %1412 = vmatprep.subr.mxu0 0.0
        %1413 = vmatpush1.msra.mxu0 0.0
        %1414 = vmatprep.subr.mxu0 0.0
        %1415 = vmatpush1.msra.mxu0 0.0
        %1416 = vmatprep.subr.mxu0 0.0
        %1417 = vmatpush1.msra.mxu0 0.0
        %1418 = vmatprep.subr.mxu0 0.0
        %1419 = vmatpush1.msra.mxu0 0.0
        %1420 = vmatprep.subr.mxu0 0.0
        %1421 = vmatpush1.msra.mxu0 0.0
        %1422 = vmatprep.subr.mxu0 0.0
        %1423 = vmatpush1.msra.mxu0 %v1226
        %1424 = vmatprep.subr.mxu0 0.0
        %1425 = vmatpush2.msra.mxu0 0.0
        %1426 = vmatprep.subr.mxu0 0.0
        %1427 = vmatpush2.msra.mxu0 0.0
        %1428 = vmatprep.subr.mxu0 0.0
        %1429 = vmatpush2.msra.mxu0 0.0
        %1430 = vmatprep.subr.mxu0 0.0
        %1431 = vmatpush2.msra.mxu0 0.0
        %1432 = vmatprep.subr.mxu0 0.0
        %1433 = vmatpush2.msra.mxu0 0.0
        %1434 = vmatprep.subr.mxu0 0.0
        %1435 = vmatpush2.msra.mxu0 0.0
        %1436 = vmatprep.subr.mxu0 0.0
        %1437 = vmatpush2.msra.mxu0 0.0
        %1438 = vmatprep.subr.mxu0 0.0
        %1439 = vmatpush2.msra.mxu0 0.0
        %1440 = vmatprep.subr.mxu0 0.0
        %1441 = vmatpush2.msra.mxu0 0.0
        %1442 = vmatprep.subr.mxu0 0.0
        %1443 = vmatpush2.msra.mxu0 0.0
        %1444 = vmatprep.subr.mxu0 0.0
        %1445 = vmatpush2.msra.mxu0 0.0
        %1446 = vmatprep.subr.mxu0 0.0
        %1447 = vmatpush2.msra.mxu0 0.0
        %1448 = vmatprep.subr.mxu0 0.0
        %1449 = vmatpush2.msra.mxu0 0.0
        %1450 = vmatprep.subr.mxu0 0.0
        %1451 = vmatpush2.msra.mxu0 0.0
        %1452 = vmatprep.subr.mxu0 0.0
        %1453 = vmatpush2.msra.mxu0 0.0
        %1454 = vmatprep.subr.mxu0 0.0
        %1455 = vmatpush2.msra.mxu0 0.0
        %1456 = vmatprep.mubr.f32.mxu0 0.0
        %1457 = vmatmul.mubr.f32.gmra.mxu0 %v1390
        %v1458 = vpop.f32.mrf.mxu0
        %v1459 = vadd.f32 %v1386, %v1458
        %v1460 = vpop.f32.mrf.mxu0
        %1461 = vdwg.mxu0
        %v1462 = vsel %vm1141, %v1129, -inf
        %1463 = vmax.xlane.f32.xlu0 %v1462
        %v1464 = vpop.xlane.xlu0 %1463
        %v1465 = vsub.f32 %v1129, %v1464
        %v1466 = vmul.f32 %v1465, 1.442695
        %v1467 = vpow.pop %v1466
        %v1468 = vsel %vm1141, %v1467, 0.0
        %1469 = vadd.xlane.f32.xlu0 %v1468
        %v1470 = vpop.xlane.xlu0 %1469
        %v1471 = vrcp.pop %v1470
        %v1472 = vmul.f32 %v1467, %v1471
        %1473 = vrot.lane.b32.xlu0 %v769, 112
        %v1474 = vpop.permute.xlu0 %1473
        %v1477 = vsel %vm1141, %v1472, 0
        %1479 = vmatprep.subr.mxu0 0.0
        %1480 = vmatpush1.msra.mxu0 0.0
        %1481 = vmatprep.subr.mxu0 0.0
        %1482 = vmatpush1.msra.mxu0 0.0
        %1483 = vmatprep.subr.mxu0 0.0
        %1484 = vmatpush1.msra.mxu0 0.0
        %1485 = vmatprep.subr.mxu0 0.0
        %1486 = vmatpush1.msra.mxu0 0.0
        %1487 = vmatprep.subr.mxu0 0.0
        %1488 = vmatpush1.msra.mxu0 0.0
        %1489 = vmatprep.subr.mxu0 0.0
        %1490 = vmatpush1.msra.mxu0 0.0
        %1491 = vmatprep.subr.mxu0 0.0
        %1492 = vmatpush1.msra.mxu0 0.0
        %1493 = vmatprep.subr.mxu0 0.0
        %1494 = vmatpush1.msra.mxu0 0.0
        %1495 = vmatprep.subr.mxu0 0.0
        %1496 = vmatpush1.msra.mxu0 0.0
        %1497 = vmatprep.subr.mxu0 0.0
        %1498 = vmatpush1.msra.mxu0 0.0
        %1499 = vmatprep.subr.mxu0 0.0
        %1500 = vmatpush1.msra.mxu0 0.0
        %1501 = vmatprep.subr.mxu0 0.0
        %1502 = vmatpush1.msra.mxu0 0.0
        %1503 = vmatprep.subr.mxu0 0.0
        %1504 = vmatpush1.msra.mxu0 0.0
        %1505 = vmatprep.subr.mxu0 0.0
        %1506 = vmatpush1.msra.mxu0 0.0
        %1507 = vmatprep.subr.mxu0 0.0
        %1508 = vmatpush1.msra.mxu0 0.0
        %1509 = vmatprep.subr.mxu0 0.0
        %1510 = vmatpush1.msra.mxu0 %v1474
        %1511 = vmatprep.subr.mxu0 0.0
        %1512 = vmatpush2.msra.mxu0 0.0
        %1513 = vmatprep.subr.mxu0 0.0
        %1514 = vmatpush2.msra.mxu0 0.0
        %1515 = vmatprep.subr.mxu0 0.0
        %1516 = vmatpush2.msra.mxu0 0.0
        %1517 = vmatprep.subr.mxu0 0.0
        %1518 = vmatpush2.msra.mxu0 0.0
        %1519 = vmatprep.subr.mxu0 0.0
        %1520 = vmatpush2.msra.mxu0 0.0
        %1521 = vmatprep.subr.mxu0 0.0
        %1522 = vmatpush2.msra.mxu0 0.0
        %1523 = vmatprep.subr.mxu0 0.0
        %1524 = vmatpush2.msra.mxu0 0.0
        %1525 = vmatprep.subr.mxu0 0.0
        %1526 = vmatpush2.msra.mxu0 0.0
        %1527 = vmatprep.subr.mxu0 0.0
        %1528 = vmatpush2.msra.mxu0 0.0
        %1529 = vmatprep.subr.mxu0 0.0
        %1530 = vmatpush2.msra.mxu0 0.0
        %1531 = vmatprep.subr.mxu0 0.0
        %1532 = vmatpush2.msra.mxu0 0.0
        %1533 = vmatprep.subr.mxu0 0.0
        %1534 = vmatpush2.msra.mxu0 0.0
        %1535 = vmatprep.subr.mxu0 0.0
        %1536 = vmatpush2.msra.mxu0 0.0
        %1537 = vmatprep.subr.mxu0 0.0
        %1538 = vmatpush2.msra.mxu0 0.0
        %1539 = vmatprep.subr.mxu0 0.0
        %1540 = vmatpush2.msra.mxu0 0.0
        %1541 = vmatprep.subr.mxu0 0.0
        %1542 = vmatpush2.msra.mxu0 0.0
        %1543 = vmatprep.mubr.f32.mxu0 0.0
        %1544 = vmatmul.mubr.f32.gmra.mxu0 %v1477
        %v1545 = vpop.f32.mrf.mxu0
        %v1546 = vadd.f32 0.0, %v1545
        %v1547 = vpop.f32.mrf.mxu0
        %1548 = vdwg.mxu0
        %v1549 = vld [vmem:[#allocation8 + $0x10] sm:$0xff]
        %v1551 = vsel %vm1141, %v1546, 0
        %1553 = vmatprep.subr.mxu0 0.0
        %1554 = vmatpush1.msra.mxu0 0.0
        %1555 = vmatprep.subr.mxu0 0.0
        %1556 = vmatpush1.msra.mxu0 0.0
        %1557 = vmatprep.subr.mxu0 0.0
        %1558 = vmatpush1.msra.mxu0 0.0
        %1559 = vmatprep.subr.mxu0 0.0
        %1560 = vmatpush1.msra.mxu0 0.0
        %1561 = vmatprep.subr.mxu0 0.0
        %1562 = vmatpush1.msra.mxu0 0.0
        %1563 = vmatprep.subr.mxu0 0.0
        %1564 = vmatpush1.msra.mxu0 0.0
        %1565 = vmatprep.subr.mxu0 0.0
        %1566 = vmatpush1.msra.mxu0 0.0
        %1567 = vmatprep.subr.mxu0 0.0
        %1568 = vmatpush1.msra.mxu0 0.0
        %1569 = vmatprep.subr.mxu0 0.0
        %1570 = vmatpush1.msra.mxu0 0.0
        %1571 = vmatprep.subr.mxu0 0.0
        %1572 = vmatpush1.msra.mxu0 0.0
        %1573 = vmatprep.subr.mxu0 0.0
        %1574 = vmatpush1.msra.mxu0 0.0
        %1575 = vmatprep.subr.mxu0 0.0
        %1576 = vmatpush1.msra.mxu0 0.0
        %1577 = vmatprep.subr.mxu0 0.0
        %1578 = vmatpush1.msra.mxu0 0.0
        %1579 = vmatprep.subr.mxu0 0.0
        %1580 = vmatpush1.msra.mxu0 0.0
        %1581 = vmatprep.subr.mxu0 0.0
        %1582 = vmatpush1.msra.mxu0 0.0
        %1583 = vmatprep.subr.mxu0 0.0
        %1584 = vmatpush1.msra.mxu0 %v1549
        %1585 = vmatprep.subr.mxu0 0.0
        %1586 = vmatpush2.msra.mxu0 0.0
        %1587 = vmatprep.subr.mxu0 0.0
        %1588 = vmatpush2.msra.mxu0 0.0
        %1589 = vmatprep.subr.mxu0 0.0
        %1590 = vmatpush2.msra.mxu0 0.0
        %1591 = vmatprep.subr.mxu0 0.0
        %1592 = vmatpush2.msra.mxu0 0.0
        %1593 = vmatprep.subr.mxu0 0.0
        %1594 = vmatpush2.msra.mxu0 0.0
        %1595 = vmatprep.subr.mxu0 0.0
        %1596 = vmatpush2.msra.mxu0 0.0
        %1597 = vmatprep.subr.mxu0 0.0
        %1598 = vmatpush2.msra.mxu0 0.0
        %1599 = vmatprep.subr.mxu0 0.0
        %1600 = vmatpush2.msra.mxu0 0.0
        %1601 = vmatprep.subr.mxu0 0.0
        %1602 = vmatpush2.msra.mxu0 0.0
        %1603 = vmatprep.subr.mxu0 0.0
        %1604 = vmatpush2.msra.mxu0 0.0
        %1605 = vmatprep.subr.mxu0 0.0
        %1606 = vmatpush2.msra.mxu0 0.0
        %1607 = vmatprep.subr.mxu0 0.0
        %1608 = vmatpush2.msra.mxu0 0.0
        %1609 = vmatprep.subr.mxu0 0.0
        %1610 = vmatpush2.msra.mxu0 0.0
        %1611 = vmatprep.subr.mxu0 0.0
        %1612 = vmatpush2.msra.mxu0 0.0
        %1613 = vmatprep.subr.mxu0 0.0
        %1614 = vmatpush2.msra.mxu0 0.0
        %1615 = vmatprep.subr.mxu0 0.0
        %1616 = vmatpush2.msra.mxu0 0.0
        %1617 = vmatprep.mubr.f32.mxu0 0.0
        %1618 = vmatmul.mubr.f32.gmra.mxu0 %v1551
        %v1619 = vpop.f32.mrf.mxu0
        %v1620 = vadd.f32 0.0, %v1619
        %v1621 = vpop.f32.mrf.mxu0
        %1622 = vdwg.mxu0
        %v1623 = vadd.f32 %v1459, %v1620
        %v1624 = vsel %vm1141, %v1140, -inf
        %1625 = vmax.xlane.f32.xlu0 %v1624
        %v1626 = vpop.xlane.xlu0 %1625
        %v1627 = vsub.f32 %v1140, %v1626
        %v1628 = vmul.f32 %v1627, 1.442695
        %v1629 = vpow.pop %v1628
        %v1630 = vsel %vm1141, %v1629, 0.0
        %1631 = vadd.xlane.f32.xlu0 %v1630
        %v1632 = vpop.xlane.xlu0 %1631
        %v1633 = vrcp.pop %v1632
        %v1634 = vmul.f32 %v1629, %v1633
        %1635 = vrot.lane.b32.xlu0 %v769, 104
        %v1636 = vpop.permute.xlu0 %1635
        %v1639 = vsel %vm1141, %v1634, 0
        %1641 = vmatprep.subr.mxu0 0.0
        %1642 = vmatpush1.msra.mxu0 0.0
        %1643 = vmatprep.subr.mxu0 0.0
        %1644 = vmatpush1.msra.mxu0 0.0
        %1645 = vmatprep.subr.mxu0 0.0
        %1646 = vmatpush1.msra.mxu0 0.0
        %1647 = vmatprep.subr.mxu0 0.0
        %1648 = vmatpush1.msra.mxu0 0.0
        %1649 = vmatprep.subr.mxu0 0.0
        %1650 = vmatpush1.msra.mxu0 0.0
        %1651 = vmatprep.subr.mxu0 0.0
        %1652 = vmatpush1.msra.mxu0 0.0
        %1653 = vmatprep.subr.mxu0 0.0
        %1654 = vmatpush1.msra.mxu0 0.0
        %1655 = vmatprep.subr.mxu0 0.0
        %1656 = vmatpush1.msra.mxu0 0.0
        %1657 = vmatprep.subr.mxu0 0.0
        %1658 = vmatpush1.msra.mxu0 0.0
        %1659 = vmatprep.subr.mxu0 0.0
        %1660 = vmatpush1.msra.mxu0 0.0
        %1661 = vmatprep.subr.mxu0 0.0
        %1662 = vmatpush1.msra.mxu0 0.0
        %1663 = vmatprep.subr.mxu0 0.0
        %1664 = vmatpush1.msra.mxu0 0.0
        %1665 = vmatprep.subr.mxu0 0.0
        %1666 = vmatpush1.msra.mxu0 0.0
        %1667 = vmatprep.subr.mxu0 0.0
        %1668 = vmatpush1.msra.mxu0 0.0
        %1669 = vmatprep.subr.mxu0 0.0
        %1670 = vmatpush1.msra.mxu0 0.0
        %1671 = vmatprep.subr.mxu0 0.0
        %1672 = vmatpush1.msra.mxu0 %v1636
        %1673 = vmatprep.subr.mxu0 0.0
        %1674 = vmatpush2.msra.mxu0 0.0
        %1675 = vmatprep.subr.mxu0 0.0
        %1676 = vmatpush2.msra.mxu0 0.0
        %1677 = vmatprep.subr.mxu0 0.0
        %1678 = vmatpush2.msra.mxu0 0.0
        %1679 = vmatprep.subr.mxu0 0.0
        %1680 = vmatpush2.msra.mxu0 0.0
        %1681 = vmatprep.subr.mxu0 0.0
        %1682 = vmatpush2.msra.mxu0 0.0
        %1683 = vmatprep.subr.mxu0 0.0
        %1684 = vmatpush2.msra.mxu0 0.0
        %1685 = vmatprep.subr.mxu0 0.0
        %1686 = vmatpush2.msra.mxu0 0.0
        %1687 = vmatprep.subr.mxu0 0.0
        %1688 = vmatpush2.msra.mxu0 0.0
        %1689 = vmatprep.subr.mxu0 0.0
        %1690 = vmatpush2.msra.mxu0 0.0
        %1691 = vmatprep.subr.mxu0 0.0
        %1692 = vmatpush2.msra.mxu0 0.0
        %1693 = vmatprep.subr.mxu0 0.0
        %1694 = vmatpush2.msra.mxu0 0.0
        %1695 = vmatprep.subr.mxu0 0.0
        %1696 = vmatpush2.msra.mxu0 0.0
        %1697 = vmatprep.subr.mxu0 0.0
        %1698 = vmatpush2.msra.mxu0 0.0
        %1699 = vmatprep.subr.mxu0 0.0
        %1700 = vmatpush2.msra.mxu0 0.0
        %1701 = vmatprep.subr.mxu0 0.0
        %1702 = vmatpush2.msra.mxu0 0.0
        %1703 = vmatprep.subr.mxu0 0.0
        %1704 = vmatpush2.msra.mxu0 0.0
        %1705 = vmatprep.mubr.f32.mxu0 0.0
        %1706 = vmatmul.mubr.f32.gmra.mxu0 %v1639
        %v1707 = vpop.f32.mrf.mxu0
        %v1708 = vadd.f32 0.0, %v1707
        %v1709 = vpop.f32.mrf.mxu0
        %1710 = vdwg.mxu0
        %v1711 = vld [vmem:[#allocation8 + $0x18] sm:$0xff]
        %v1713 = vsel %vm1141, %v1708, 0
        %1715 = vmatprep.subr.mxu0 0.0
        %1716 = vmatpush1.msra.mxu0 0.0
        %1717 = vmatprep.subr.mxu0 0.0
        %1718 = vmatpush1.msra.mxu0 0.0
        %1719 = vmatprep.subr.mxu0 0.0
        %1720 = vmatpush1.msra.mxu0 0.0
        %1721 = vmatprep.subr.mxu0 0.0
        %1722 = vmatpush1.msra.mxu0 0.0
        %1723 = vmatprep.subr.mxu0 0.0
        %1724 = vmatpush1.msra.mxu0 0.0
        %1725 = vmatprep.subr.mxu0 0.0
        %1726 = vmatpush1.msra.mxu0 0.0
        %1727 = vmatprep.subr.mxu0 0.0
        %1728 = vmatpush1.msra.mxu0 0.0
        %1729 = vmatprep.subr.mxu0 0.0
        %1730 = vmatpush1.msra.mxu0 0.0
        %1731 = vmatprep.subr.mxu0 0.0
        %1732 = vmatpush1.msra.mxu0 0.0
        %1733 = vmatprep.subr.mxu0 0.0
        %1734 = vmatpush1.msra.mxu0 0.0
        %1735 = vmatprep.subr.mxu0 0.0
        %1736 = vmatpush1.msra.mxu0 0.0
        %1737 = vmatprep.subr.mxu0 0.0
        %1738 = vmatpush1.msra.mxu0 0.0
        %1739 = vmatprep.subr.mxu0 0.0
        %1740 = vmatpush1.msra.mxu0 0.0
        %1741 = vmatprep.subr.mxu0 0.0
        %1742 = vmatpush1.msra.mxu0 0.0
        %1743 = vmatprep.subr.mxu0 0.0
        %1744 = vmatpush1.msra.mxu0 0.0
        %1745 = vmatprep.subr.mxu0 0.0
        %1746 = vmatpush1.msra.mxu0 %v1711
        %1747 = vmatprep.subr.mxu0 0.0
        %1748 = vmatpush2.msra.mxu0 0.0
        %1749 = vmatprep.subr.mxu0 0.0
        %1750 = vmatpush2.msra.mxu0 0.0
        %1751 = vmatprep.subr.mxu0 0.0
        %1752 = vmatpush2.msra.mxu0 0.0
        %1753 = vmatprep.subr.mxu0 0.0
        %1754 = vmatpush2.msra.mxu0 0.0
        %1755 = vmatprep.subr.mxu0 0.0
        %1756 = vmatpush2.msra.mxu0 0.0
        %1757 = vmatprep.subr.mxu0 0.0
        %1758 = vmatpush2.msra.mxu0 0.0
        %1759 = vmatprep.subr.mxu0 0.0
        %1760 = vmatpush2.msra.mxu0 0.0
        %1761 = vmatprep.subr.mxu0 0.0
        %1762 = vmatpush2.msra.mxu0 0.0
        %1763 = vmatprep.subr.mxu0 0.0
        %1764 = vmatpush2.msra.mxu0 0.0
        %1765 = vmatprep.subr.mxu0 0.0
        %1766 = vmatpush2.msra.mxu0 0.0
        %1767 = vmatprep.subr.mxu0 0.0
        %1768 = vmatpush2.msra.mxu0 0.0
        %1769 = vmatprep.subr.mxu0 0.0
        %1770 = vmatpush2.msra.mxu0 0.0
        %1771 = vmatprep.subr.mxu0 0.0
        %1772 = vmatpush2.msra.mxu0 0.0
        %1773 = vmatprep.subr.mxu0 0.0
        %1774 = vmatpush2.msra.mxu0 0.0
        %1775 = vmatprep.subr.mxu0 0.0
        %1776 = vmatpush2.msra.mxu0 0.0
        %1777 = vmatprep.subr.mxu0 0.0
        %1778 = vmatpush2.msra.mxu0 0.0
        %1779 = vmatprep.mubr.f32.mxu0 0.0
        %1780 = vmatmul.mubr.f32.gmra.mxu0 %v1713
        %v1781 = vpop.f32.mrf.mxu0
        %v1782 = vadd.f32 0.0, %v1781
        %v1783 = vpop.f32.mrf.mxu0
        %1784 = vdwg.mxu0
        %v1785 = vadd.f32 %v1623, %v1782
        %v1786 = vld [vmem:[%s8] sm:$0x1]
        %v1788 = vlaneseq
        %v1789 = vshrl.u32 %v1788, 7
        %v1790 = vsub.s32 0, %v1789
        %v1791 = vrot.slane %v1786, %v1790
        %v1793 = vadd.f32 %v1785, %v1791
        %v1794 = vadd.f32 %v1793, %v511
        %v1795 = vsel %vm520, %v1794, 0.0
        %1796 = vadd.xlane.f32.xlu0 %v1795
        %v1797 = vpop.xlane.xlu0 %1796
        %v1798 = vrcp.pop 32.0
        %v1799 = vmul.f32 %v1797, %v1798
        %v1800 = vsub.f32 %v1794, %v1799
        %v1801 = vmul.f32 %v1800, %v1800
        %v1802 = vsel %vm520, %v1801, 0.0
        %1803 = vadd.xlane.f32.xlu0 %v1802
        %v1804 = vpop.xlane.xlu0 %1803
        %v1805 = vmul.f32 %v1804, %v1798
        %v1806 = vadd.f32 %v1805, 1e-06
        %v1807 = vrsqrt.pop %v1806
        %v1808 = vmul.f32 %v1800, %v1807
        %v1809 = vld [vmem:[%s9] sm:$0x1]
        %v1811 = vlaneseq
        %v1812 = vshrl.u32 %v1811, 7
        %v1813 = vsub.s32 0, %v1812
        %v1814 = vrot.slane %v1809, %v1813
        %v1816 = vmul.f32 %v1808, %v1814
        %v1817 = vld [vmem:[%s10] sm:$0x1]
        %v1819 = vlaneseq
        %v1820 = vshrl.u32 %v1819, 7
        %v1821 = vsub.s32 0, %v1820
        %v1822 = vrot.slane %v1817, %v1821
        %v1824 = vadd.f32 %v1816, %v1822
        %1825 = vst.msk [vmem:[%s498] sm:$0xff] %vm520, %v1824
        %s1826 = sand.u32 %s305, 1
        %s1827 = scalar_lea.sflag [#allocation4], %s1826
        %s1828 = sand.u32 %s305, 1
        %s1829 = smul.addr %s1828, 8
        %s1830 = scalar_lea.vmem [#allocation10], %s1829
        // Predicated region
        $region81: #{tpu_custom_call.1} parent=63 // pred_check
          %p1831 = pneg %p315
        $region82: #{tpu_custom_call.1} parent=63 // pred_check_branch
          %1833 = sbr.rel (%p1831) target = $region84
        $region83: #{tpu_custom_call.1} parent=63 // pred_region
          %s1835 = ssub.s32 128, 128
          %1836 = vsyncadd %s1827, %s1835
          %s1837 = sadd.s32 %s35, %s34
          %s1838 = smul.addr %s1837, 128
          %s1839 = scalar_lea.hbm %s11, %s1838
          %s1841 = sshll.u32 %s1830, 4
          %s1842 = int_to_ptr.vmem [resolvable:$true] %s1841
          %1844 = dma.vmem_to_hbm [thread:$0]  %s1842, 128, %s1839, %s1827
        $region84: #{tpu_custom_call.1} parent=63 // pred_fallthru
          _
      $region64: #{tpu_custom_call.1} parent=5 // pred_fallthru
        _
      %p1845 = scmp.le.s32.totalorder 2, %s25
      // Predicated region
      $region85: #{tpu_custom_call.1} parent=5 // pred_check
        %p1846 = pneg %p1845
      $region86: #{tpu_custom_call.1} parent=5 // pred_check_branch
        %1848 = sbr.rel (%p1846) target = $region88
      $region87: #{tpu_custom_call.1} parent=5 // pred_region
        %s1849 = ssub.s32 %s25, 2
        // Predicated region
        $region89: #{tpu_custom_call.1} parent=87 // pred_check
          %p1850 = pneg %p321
        $region90: #{tpu_custom_call.1} parent=87 // pred_check_branch
          %1852 = sbr.rel (%p1850) target = $region92
        $region91: #{tpu_custom_call.1} parent=87 // pred_region
          %s1853 = sand.u32 %s306, 1
          %s1854 = scalar_lea.sflag [#allocation4], %s1853
          %s1855 = sand.u32 %s306, 1
          %s1856 = smul.addr %s1855, 8
          %s1857 = scalar_lea.vmem [#allocation10], %s1856
          %1858 = dma.done %s1854, 128
        $region92: #{tpu_custom_call.1} parent=87 // pred_fallthru
          _
      $region88: #{tpu_custom_call.1} parent=5 // pred_fallthru
        _
    $region6: #{tpu_custom_call.1} parent=1 // loop_footer
      %s29 = sadd.s32 1, %s25
    $region7: #{tpu_custom_call.1} parent=1 // loop_footer_branch
      %24 = sbr.rel target = $region3
    $region8: #{tpu_custom_call.1} parent=1 // loop_exit
      _
    %1859 = vsyncpa [#allocation3], 1
    %s1860 = scalar_lea.sflag [#allocation3], 1
    %1861 = vsyncpa %s1860, 1
    %1862 = vsyncpa [#allocation6], 1
    %1863 = vsyncpa [#allocation9], 1
    %1864 = vsyncpa [#allocation4], 1
    %s1865 = scalar_lea.sflag [#allocation4], 1
    %1866 = vsyncpa %s1865, 1

</llo_original>
